<compile_context>
chip_gen: v7x
topology: tpu7x:2x2x1
jax: 0.10.0
libtpu: 0.0.40
codegen_flags: <defaults>
</compile_context>

<pallas_src>
import jax
import jax.numpy as jnp
from jax.experimental import pallas as pl
from jax.experimental.pallas import tpu as pltpu


def _round_up(x, m):
    return ((x + m - 1) // m) * m


def _vit_mlp_kernel(x_ref, w_in_ref, b_in_ref, w1_ref, b1_ref,
                    w2_ref, b2_ref, w_out_ref, b_out_ref, o_ref):
    """Fused: out = (relu((x@Win+bin)@W1+b1)@W2+b2) @ Wout + bout.

    Matmul operands are in the weights' dtype (f32 or bf16); accumulation,
    bias adds and ReLU stay f32; single cast at the final store.
    """
    mm_dtype = w_in_ref.dtype
    x = x_ref[...]
    # input_projection
    h = jnp.dot(x, w_in_ref[...], preferred_element_type=jnp.float32)
    h = h + b_in_ref[...]
    # mlp: Linear -> ReLU -> Linear
    h1 = jnp.dot(h.astype(mm_dtype), w1_ref[...],
                 preferred_element_type=jnp.float32)
    h1 = jnp.maximum(h1 + b1_ref[...], 0.0)
    h2 = jnp.dot(h1.astype(mm_dtype), w2_ref[...],
                 preferred_element_type=jnp.float32)
    h2 = h2 + b2_ref[...]
    # output_projection
    out = jnp.dot(h2.astype(mm_dtype), w_out_ref[...],
                  preferred_element_type=jnp.float32)
    out = out + b_out_ref[...]
    o_ref[...] = out.astype(o_ref.dtype)


def _choose_token_tile(N, din_p, dout_p, h_p, x_bytes, out_bytes,
                       w_bytes, cap=512, vmem_budget=24 * 1024 * 1024):
    """Sublane-aligned token tile that fits a conservative scoped-VMEM budget
    (24 MiB leaves headroom under the 32 MiB scoped default on v6e/v7x)."""
    # Resident weights + f32 biases (single-buffered).
    weight_bytes = ((din_p * h_p + 2 * h_p * h_p + h_p * dout_p) * w_bytes
                    + (3 * h_p + dout_p) * 4)
    # Per token row: double-buffered x and out blocks + ~3 live (tn, H) f32
    # intermediates inside the kernel body.
    per_row = 2 * din_p * x_bytes + 2 * dout_p * out_bytes + 3 * h_p * 4
    tn_budget = max(8, int((vmem_budget - weight_bytes) // per_row))
    cap_eff = max(8, min(cap, tn_budget))
    if N <= cap_eff:                       # tiny problem: one grid step
        return _round_up(N, 8)
    # >= 2 roughly balanced blocks (keeps both v7x TensorCores busy).
    nb = max(2, pl.cdiv(N, cap_eff))
    return _round_up(pl.cdiv(N, nb), 8)


def vit_like_forward(x, params, *, compute_dtype=None, feature_align=128,
                     tokens_per_block=None):
    """x: (B, S, Din). params: (w_in, b_in, w1, b1, w2, b2, w_out, b_out)
    with weights already in (in_features, out_features) layout."""
    B, S, Din = x.shape
    w_in, b_in, w1, b1, w2, b2, w_out, b_out = params
    H = w_in.shape[1]
    out_dtype = x.dtype
    N = B * S

    # bf16 MXU path only once the GEMMs are non-trivial; toy shapes stay f32.
    if compute_dtype is None:
        compute_dtype = jnp.bfloat16 if N >= 256 else x.dtype
    compute_dtype = jnp.dtype(compute_dtype)

    # Pad feature dims to lane multiples: lane-dense output store, full MXU
    # tiles.  (On v6e/v7x prefer feature_align=256 when H is large.)
    Din_p = _round_up(Din, feature_align)
    H_p = _round_up(H, feature_align)

    def pad_w(a, r, c):
        return jnp.pad(a, ((0, r - a.shape[0]),
                           (0, c - a.shape[1]))).astype(compute_dtype)

    def pad_b(b, c):   # biases stay f32 (f32 epilogue on all chips)
        return jnp.pad(b, (0, c - b.shape[0])).reshape(1, c).astype(jnp.float32)

    x2d = x.reshape(N, Din)
    if Din_p != Din:
        x2d = jnp.pad(x2d, ((0, 0), (0, Din_p - Din)))
    x2d = x2d.astype(compute_dtype)

    w_in_p = pad_w(w_in, Din_p, H_p)
    w1_p = pad_w(w1, H_p, H_p)
    w2_p = pad_w(w2, H_p, H_p)
    w_out_p = pad_w(w_out, H_p, Din_p)
    b_in_p, b1_p, b2_p = pad_b(b_in, H_p), pad_b(b1, H_p), pad_b(b2, H_p)
    b_out_p = pad_b(b_out, Din_p)

    # Token tiling.
    if tokens_per_block is not None:
        tn = max(8, (min(tokens_per_block, N) // 8) * 8)
    else:
        tn = _choose_token_tile(N, Din_p, Din_p, H_p,
                                compute_dtype.itemsize,
                                jnp.dtype(out_dtype).itemsize,
                                compute_dtype.itemsize)
    n_blocks = pl.cdiv(N, tn)
    N_pad = n_blocks * tn
    if N_pad != N:
        x2d = jnp.pad(x2d, ((0, N_pad - N), (0, 0)))

    operands = (x2d, w_in_p, b_in_p, w1_p, b1_p, w2_p, b2_p, w_out_p, b_out_p)
    flops = 2 * N_pad * (Din_p * H_p + 2 * H_p * H_p + H_p * Din_p)
    bytes_accessed = (sum(int(a.size) * a.dtype.itemsize for a in operands)
                      + N_pad * Din_p * jnp.dtype(out_dtype).itemsize)

    def build(weight_mode):
        def wspec(shape):
            # Weight/bias block = full array, same block index every grid step.
            if weight_mode is None:
                return pl.BlockSpec(shape, lambda i: (0, 0))
            return pl.BlockSpec(shape, lambda i: (0, 0),
                                pipeline_mode=weight_mode)

        return pl.pallas_call(
            _vit_mlp_kernel,
            out_shape=jax.ShapeDtypeStruct((N_pad, Din_p), out_dtype),
            grid_spec=pltpu.PrefetchScalarGridSpec(
                num_scalar_prefetch=0,
                grid=(n_blocks,),
                in_specs=[
                    pl.BlockSpec((tn, Din_p), lambda i: (i, 0)),   # x tokens
                    wspec((Din_p, H_p)), wspec((1, H_p)),          # input proj
                    wspec((H_p, H_p)), wspec((1, H_p)),            # mlp[0]
                    wspec((H_p, H_p)), wspec((1, H_p)),            # mlp[2]
                    wspec((H_p, Din_p)), wspec((1, Din_p)),        # output proj
                ],
                out_specs=pl.BlockSpec((tn, Din_p), lambda i: (i, 0)),
            ),
            compiler_params=pltpu.CompilerParams(
                dimension_semantics=("parallel",),
                vmem_limit_bytes=32 * 1024 * 1024,
            ),
            cost_estimate=pl.CostEstimate(
                flops=flops, transcendentals=0, bytes_accessed=bytes_accessed),
        )

    weight_mode = pl.Buffered(1) if hasattr(pl, "Buffered") else None
    try:
        out2d = jax.block_until_ready(build(weight_mode)(*operands))
    except Exception:
        # Fallback if single-buffered weight specs are rejected on this jax.
        out2d = build(None)(*operands)

    return out2d[:N, :Din].reshape(B, S, Din)


def _reference_forward(x, params, compute_dtype):
    """Pure-JAX mirror of the kernel math (same operand rounding)."""
    w_in, b_in, w1, b1, w2, b2, w_out, b_out = params
    f32 = jnp.float32

    def mm(a, w):
        return jnp.dot(a.astype(compute_dtype).astype(f32),
                       w.astype(compute_dtype).astype(f32))

    h = mm(x, w_in) + b_in
    h = jnp.maximum(mm(h, w1) + b1, 0.0)
    h = mm(h, w2) + b2
    return mm(h, w_out) + b_out


def _make_params(key, din, h, scale, dtype=jnp.float32):
    ks = jax.random.split(key, 8)
    # PyTorch nn.Linear stores (out, in); we build the transposed (in, out)
    # layout directly so the kernel computes x @ W + b (same math as F.linear).
    return (jax.random.normal(ks[0], (din, h), dtype) * scale,
            jax.random.normal(ks[1], (h,), dtype) * scale,
            jax.random.normal(ks[2], (h, h), dtype) * scale,
            jax.random.normal(ks[3], (h,), dtype) * scale,
            jax.random.normal(ks[4], (h, h), dtype) * scale,
            jax.random.normal(ks[5], (h,), dtype) * scale,
            jax.random.normal(ks[6], (h, din), dtype) * scale,
            jax.random.normal(ks[7], (din,), dtype) * scale)


if __name__ == "__main__":
    key = jax.random.PRNGKey(0)
    k_toy_p, k_toy_x, k_big_p, k_big_x = jax.random.split(key, 4)

    # --- Test 1: module's toy shape (batch=2, seq=8, input_dim=32, hidden=32).
    #     Small N -> single grid step, f32 compute, tight tolerance.
    B, S, Din, H = 2, 8, 32, 32
    params = _make_params(k_toy_p, Din, H, 0.1)
    x = jax.random.normal(k_toy_x, (B, S, Din), jnp.float32)

    out = jax.block_until_ready(vit_like_forward(x, params))
    ref = _reference_forward(x, params, jnp.float32)
    assert out.shape == (B, S, Din)
    assert jnp.allclose(out, ref, atol=1e-5, rtol=1e-5)

    # --- Test 2: scaled shape exercising the multi-block grid, feature-dim
    #     padding and the bf16 MXU path (f32 accumulation / epilogue).
    B2, S2, Din2, H2 = 2, 512, 96, 160
    params2 = _make_params(k_big_p, Din2, H2, 0.05)
    x2 = jax.random.normal(k_big_x, (B2, S2, Din2), jnp.float32)

    out2 = jax.block_until_ready(
        vit_like_forward(x2, params2, compute_dtype=jnp.bfloat16))
    ref2 = _reference_forward(x2, params2, jnp.bfloat16)
    assert out2.shape == (B2, S2, Din2)
    assert jnp.allclose(out2, ref2, atol=1e-2, rtol=1e-2)

    print("KERNEL_OK")
</pallas_src>

<mosaic_0001>
module attributes {stable_mosaic.version = 11 : i64} {
  func.func @_vit_mlp_kernel(%arg0: i32, %arg1: memref<16x128xf32, #tpu.memory_space<vmem>>, %arg2: memref<128x128xf32, #tpu.memory_space<vmem>>, %arg3: memref<1x128xf32, #tpu.memory_space<vmem>>, %arg4: memref<128x128xf32, #tpu.memory_space<vmem>>, %arg5: memref<1x128xf32, #tpu.memory_space<vmem>>, %arg6: memref<128x128xf32, #tpu.memory_space<vmem>>, %arg7: memref<1x128xf32, #tpu.memory_space<vmem>>, %arg8: memref<128x128xf32, #tpu.memory_space<vmem>>, %arg9: memref<1x128xf32, #tpu.memory_space<vmem>>, %arg10: memref<16x128xf32, #tpu.memory_space<vmem>>) attributes {dimension_semantics = [#tpu.dimension_semantics<parallel>], iteration_bounds = array<i64: 1>, scalar_prefetch = 0 : i64, scratch_operands = 0 : i64, tpu.core_type = #tpu.core_type<tc>, window_params = [{transform_indices = @transform_0, window_bounds = array<i64: 16, 128>}, {pipeline_mode = #tpu.pipeline_mode<synchronous>, transform_indices = @transform_1, window_bounds = array<i64: 128, 128>}, {pipeline_mode = #tpu.pipeline_mode<synchronous>, transform_indices = @transform_2, window_bounds = array<i64: 1, 128>}, {pipeline_mode = #tpu.pipeline_mode<synchronous>, transform_indices = @transform_3, window_bounds = array<i64: 128, 128>}, {pipeline_mode = #tpu.pipeline_mode<synchronous>, transform_indices = @transform_4, window_bounds = array<i64: 1, 128>}, {pipeline_mode = #tpu.pipeline_mode<synchronous>, transform_indices = @transform_5, window_bounds = array<i64: 128, 128>}, {pipeline_mode = #tpu.pipeline_mode<synchronous>, transform_indices = @transform_6, window_bounds = array<i64: 1, 128>}, {pipeline_mode = #tpu.pipeline_mode<synchronous>, transform_indices = @transform_7, window_bounds = array<i64: 128, 128>}, {pipeline_mode = #tpu.pipeline_mode<synchronous>, transform_indices = @transform_8, window_bounds = array<i64: 1, 128>}, {transform_indices = @transform_9, window_bounds = array<i64: 16, 128>}]} {
    %c0 = arith.constant 0 : index
    %c0_0 = arith.constant 0 : index
    %0 = vector.load %arg1[%c0, %c0_0] : memref<16x128xf32, #tpu.memory_space<vmem>>, vector<16x128xf32>
    %c0_1 = arith.constant 0 : index
    %c0_2 = arith.constant 0 : index
    %1 = vector.load %arg2[%c0_1, %c0_2] : memref<128x128xf32, #tpu.memory_space<vmem>>, vector<128x128xf32>
    %cst = arith.constant dense<0.000000e+00> : vector<16x128xf32>
    %2 = tpu.matmul %0, %1, %cst {dimension_numbers = #tpu.dot_dimension_numbers<[1], [0], [0], [1], [0, 0, 1, 1], [], []>} : vector<16x128xf32>, vector<128x128xf32>, vector<16x128xf32> -> vector<16x128xf32>
    %c0_3 = arith.constant 0 : index
    %c0_4 = arith.constant 0 : index
    %3 = vector.load %arg3[%c0_3, %c0_4] : memref<1x128xf32, #tpu.memory_space<vmem>>, vector<1x128xf32>
    %4 = vector.broadcast %3 : vector<1x128xf32> to vector<16x128xf32>
    %5 = arith.addf %2, %4 : vector<16x128xf32>
    %c0_5 = arith.constant 0 : index
    %c0_6 = arith.constant 0 : index
    %6 = vector.load %arg4[%c0_5, %c0_6] : memref<128x128xf32, #tpu.memory_space<vmem>>, vector<128x128xf32>
    %cst_7 = arith.constant dense<0.000000e+00> : vector<16x128xf32>
    %7 = tpu.matmul %5, %6, %cst_7 {dimension_numbers = #tpu.dot_dimension_numbers<[1], [0], [0], [1], [0, 0, 1, 1], [], []>} : vector<16x128xf32>, vector<128x128xf32>, vector<16x128xf32> -> vector<16x128xf32>
    %c0_8 = arith.constant 0 : index
    %c0_9 = arith.constant 0 : index
    %8 = vector.load %arg5[%c0_8, %c0_9] : memref<1x128xf32, #tpu.memory_space<vmem>>, vector<1x128xf32>
    %9 = vector.broadcast %8 : vector<1x128xf32> to vector<16x128xf32>
    %10 = arith.addf %7, %9 : vector<16x128xf32>
    %cst_10 = arith.constant 0.000000e+00 : f32
    %11 = vector.broadcast %cst_10 : f32 to vector<16x128xf32>
    %12 = arith.maximumf %10, %11 : vector<16x128xf32>
    %c0_11 = arith.constant 0 : index
    %c0_12 = arith.constant 0 : index
    %13 = vector.load %arg6[%c0_11, %c0_12] : memref<128x128xf32, #tpu.memory_space<vmem>>, vector<128x128xf32>
    %cst_13 = arith.constant dense<0.000000e+00> : vector<16x128xf32>
    %14 = tpu.matmul %12, %13, %cst_13 {dimension_numbers = #tpu.dot_dimension_numbers<[1], [0], [0], [1], [0, 0, 1, 1], [], []>} : vector<16x128xf32>, vector<128x128xf32>, vector<16x128xf32> -> vector<16x128xf32>
    %c0_14 = arith.constant 0 : index
    %c0_15 = arith.constant 0 : index
    %15 = vector.load %arg7[%c0_14, %c0_15] : memref<1x128xf32, #tpu.memory_space<vmem>>, vector<1x128xf32>
    %16 = vector.broadcast %15 : vector<1x128xf32> to vector<16x128xf32>
    %17 = arith.addf %14, %16 : vector<16x128xf32>
    %c0_16 = arith.constant 0 : index
    %c0_17 = arith.constant 0 : index
    %18 = vector.load %arg8[%c0_16, %c0_17] : memref<128x128xf32, #tpu.memory_space<vmem>>, vector<128x128xf32>
    %cst_18 = arith.constant dense<0.000000e+00> : vector<16x128xf32>
    %19 = tpu.matmul %17, %18, %cst_18 {dimension_numbers = #tpu.dot_dimension_numbers<[1], [0], [0], [1], [0, 0, 1, 1], [], []>} : vector<16x128xf32>, vector<128x128xf32>, vector<16x128xf32> -> vector<16x128xf32>
    %c0_19 = arith.constant 0 : index
    %c0_20 = arith.constant 0 : index
    %20 = vector.load %arg9[%c0_19, %c0_20] : memref<1x128xf32, #tpu.memory_space<vmem>>, vector<1x128xf32>
    %21 = vector.broadcast %20 : vector<1x128xf32> to vector<16x128xf32>
    %22 = arith.addf %19, %21 : vector<16x128xf32>
    %c0_21 = arith.constant 0 : index
    %c0_22 = arith.constant 0 : index
    %23 = vector.load %arg10[%c0_21, %c0_22] : memref<16x128xf32, #tpu.memory_space<vmem>>, vector<16x128xf32>
    tpu.vector_store %arg10[%c0_21, %c0_22], %22 {strides = array<i32>} : memref<16x128xf32, #tpu.memory_space<vmem>>, vector<16x128xf32>,
    return
  }
  func.func @transform_0(%arg0: i32) -> (i32, i32) {
    %c0_i32 = arith.constant 0 : i32
    %c0_i32_0 = arith.constant 0 : i32
    return %arg0, %c0_i32 : i32, i32
  }
  func.func @transform_1(%arg0: i32) -> (i32, i32) {
    %c0_i32 = arith.constant 0 : i32
    %c0_i32_0 = arith.constant 0 : i32
    %c0_i32_1 = arith.constant 0 : i32
    return %c0_i32, %c0_i32_0 : i32, i32
  }
  func.func @transform_2(%arg0: i32) -> (i32, i32) {
    %c0_i32 = arith.constant 0 : i32
    %c0_i32_0 = arith.constant 0 : i32
    %c0_i32_1 = arith.constant 0 : i32
    return %c0_i32, %c0_i32_0 : i32, i32
  }
  func.func @transform_3(%arg0: i32) -> (i32, i32) {
    %c0_i32 = arith.constant 0 : i32
    %c0_i32_0 = arith.constant 0 : i32
    %c0_i32_1 = arith.constant 0 : i32
    return %c0_i32, %c0_i32_0 : i32, i32
  }
  func.func @transform_4(%arg0: i32) -> (i32, i32) {
    %c0_i32 = arith.constant 0 : i32
    %c0_i32_0 = arith.constant 0 : i32
    %c0_i32_1 = arith.constant 0 : i32
    return %c0_i32, %c0_i32_0 : i32, i32
  }
  func.func @transform_5(%arg0: i32) -> (i32, i32) {
    %c0_i32 = arith.constant 0 : i32
    %c0_i32_0 = arith.constant 0 : i32
    %c0_i32_1 = arith.constant 0 : i32
    return %c0_i32, %c0_i32_0 : i32, i32
  }
  func.func @transform_6(%arg0: i32) -> (i32, i32) {
    %c0_i32 = arith.constant 0 : i32
    %c0_i32_0 = arith.constant 0 : i32
    %c0_i32_1 = arith.constant 0 : i32
    return %c0_i32, %c0_i32_0 : i32, i32
  }
  func.func @transform_7(%arg0: i32) -> (i32, i32) {
    %c0_i32 = arith.constant 0 : i32
    %c0_i32_0 = arith.constant 0 : i32
    %c0_i32_1 = arith.constant 0 : i32
    return %c0_i32, %c0_i32_0 : i32, i32
  }
  func.func @transform_8(%arg0: i32) -> (i32, i32) {
    %c0_i32 = arith.constant 0 : i32
    %c0_i32_0 = arith.constant 0 : i32
    %c0_i32_1 = arith.constant 0 : i32
    return %c0_i32, %c0_i32_0 : i32, i32
  }
  func.func @transform_9(%arg0: i32) -> (i32, i32) {
    %c0_i32 = arith.constant 0 : i32
    %c0_i32_0 = arith.constant 0 : i32
    return %arg0, %c0_i32 : i32, i32
  }
}

module attributes {stable_mosaic.version = 11 : i64} {
  func.func @_vit_mlp_kernel(%arg0: i32, %arg1: memref<16x128xf32, #tpu.memory_space<vmem>>, %arg2: memref<128x128xf32, #tpu.memory_space<vmem>>, %arg3: memref<1x128xf32, #tpu.memory_space<vmem>>, %arg4: memref<128x128xf32, #tpu.memory_space<vmem>>, %arg5: memref<1x128xf32, #tpu.memory_space<vmem>>, %arg6: memref<128x128xf32, #tpu.memory_space<vmem>>, %arg7: memref<1x128xf32, #tpu.memory_space<vmem>>, %arg8: memref<128x128xf32, #tpu.memory_space<vmem>>, %arg9: memref<1x128xf32, #tpu.memory_space<vmem>>, %arg10: memref<16x128xf32, #tpu.memory_space<vmem>>) attributes {dimension_semantics = [#tpu.dimension_semantics<parallel>], iteration_bounds = array<i64: 1>, scalar_prefetch = 0 : i64, scratch_operands = 0 : i64, tpu.core_type = #tpu.core_type<tc>, window_params = [{transform_indices = @transform_0, window_bounds = array<i64: 16, 128>}, {pipeline_mode = #tpu.pipeline_mode<synchronous>, transform_indices = @transform_1, window_bounds = array<i64: 128, 128>}, {pipeline_mode = #tpu.pipeline_mode<synchronous>, transform_indices = @transform_2, window_bounds = array<i64: 1, 128>}, {pipeline_mode = #tpu.pipeline_mode<synchronous>, transform_indices = @transform_3, window_bounds = array<i64: 128, 128>}, {pipeline_mode = #tpu.pipeline_mode<synchronous>, transform_indices = @transform_4, window_bounds = array<i64: 1, 128>}, {pipeline_mode = #tpu.pipeline_mode<synchronous>, transform_indices = @transform_5, window_bounds = array<i64: 128, 128>}, {pipeline_mode = #tpu.pipeline_mode<synchronous>, transform_indices = @transform_6, window_bounds = array<i64: 1, 128>}, {pipeline_mode = #tpu.pipeline_mode<synchronous>, transform_indices = @transform_7, window_bounds = array<i64: 128, 128>}, {pipeline_mode = #tpu.pipeline_mode<synchronous>, transform_indices = @transform_8, window_bounds = array<i64: 1, 128>}, {transform_indices = @transform_9, window_bounds = array<i64: 16, 128>}]} {
    %c0 = arith.constant 0 : index
    %c0_0 = arith.constant 0 : index
    %0 = vector.load %arg1[%c0, %c0_0] : memref<16x128xf32, #tpu.memory_space<vmem>>, vector<16x128xf32>
    %c0_1 = arith.constant 0 : index
    %c0_2 = arith.constant 0 : index
    %1 = vector.load %arg2[%c0_1, %c0_2] : memref<128x128xf32, #tpu.memory_space<vmem>>, vector<128x128xf32>
    %cst = arith.constant dense<0.000000e+00> : vector<16x128xf32>
    %2 = tpu.matmul %0, %1, %cst {dimension_numbers = #tpu.dot_dimension_numbers<[1], [0], [0], [1], [0, 0, 1, 1], [], []>} : vector<16x128xf32>, vector<128x128xf32>, vector<16x128xf32> -> vector<16x128xf32>
    %c0_3 = arith.constant 0 : index
    %c0_4 = arith.constant 0 : index
    %3 = vector.load %arg3[%c0_3, %c0_4] : memref<1x128xf32, #tpu.memory_space<vmem>>, vector<1x128xf32>
    %4 = vector.broadcast %3 : vector<1x128xf32> to vector<16x128xf32>
    %5 = arith.addf %2, %4 : vector<16x128xf32>
    %c0_5 = arith.constant 0 : index
    %c0_6 = arith.constant 0 : index
    %6 = vector.load %arg4[%c0_5, %c0_6] : memref<128x128xf32, #tpu.memory_space<vmem>>, vector<128x128xf32>
    %cst_7 = arith.constant dense<0.000000e+00> : vector<16x128xf32>
    %7 = tpu.matmul %5, %6, %cst_7 {dimension_numbers = #tpu.dot_dimension_numbers<[1], [0], [0], [1], [0, 0, 1, 1], [], []>} : vector<16x128xf32>, vector<128x128xf32>, vector<16x128xf32> -> vector<16x128xf32>
    %c0_8 = arith.constant 0 : index
    %c0_9 = arith.constant 0 : index
    %8 = vector.load %arg5[%c0_8, %c0_9] : memref<1x128xf32, #tpu.memory_space<vmem>>, vector<1x128xf32>
    %9 = vector.broadcast %8 : vector<1x128xf32> to vector<16x128xf32>
    %10 = arith.addf %7, %9 : vector<16x128xf32>
    %cst_10 = arith.constant 0.000000e+00 : f32
    %11 = vector.broadcast %cst_10 : f32 to vector<16x128xf32>
    %12 = arith.maximumf %10, %11 : vector<16x128xf32>
    %c0_11 = arith.constant 0 : index
    %c0_12 = arith.constant 0 : index
    %13 = vector.load %arg6[%c0_11, %c0_12] : memref<128x128xf32, #tpu.memory_space<vmem>>, vector<128x128xf32>
    %cst_13 = arith.constant dense<0.000000e+00> : vector<16x128xf32>
    %14 = tpu.matmul %12, %13, %cst_13 {dimension_numbers = #tpu.dot_dimension_numbers<[1], [0], [0], [1], [0, 0, 1, 1], [], []>} : vector<16x128xf32>, vector<128x128xf32>, vector<16x128xf32> -> vector<16x128xf32>
    %c0_14 = arith.constant 0 : index
    %c0_15 = arith.constant 0 : index
    %15 = vector.load %arg7[%c0_14, %c0_15] : memref<1x128xf32, #tpu.memory_space<vmem>>, vector<1x128xf32>
    %16 = vector.broadcast %15 : vector<1x128xf32> to vector<16x128xf32>
    %17 = arith.addf %14, %16 : vector<16x128xf32>
    %c0_16 = arith.constant 0 : index
    %c0_17 = arith.constant 0 : index
    %18 = vector.load %arg8[%c0_16, %c0_17] : memref<128x128xf32, #tpu.memory_space<vmem>>, vector<128x128xf32>
    %cst_18 = arith.constant dense<0.000000e+00> : vector<16x128xf32>
    %19 = tpu.matmul %17, %18, %cst_18 {dimension_numbers = #tpu.dot_dimension_numbers<[1], [0], [0], [1], [0, 0, 1, 1], [], []>} : vector<16x128xf32>, vector<128x128xf32>, vector<16x128xf32> -> vector<16x128xf32>
    %c0_19 = arith.constant 0 : index
    %c0_20 = arith.constant 0 : index
    %20 = vector.load %arg9[%c0_19, %c0_20] : memref<1x128xf32, #tpu.memory_space<vmem>>, vector<1x128xf32>
    %21 = vector.broadcast %20 : vector<1x128xf32> to vector<16x128xf32>
    %22 = arith.addf %19, %21 : vector<16x128xf32>
    %c0_21 = arith.constant 0 : index
    %c0_22 = arith.constant 0 : index
    %23 = vector.load %arg10[%c0_21, %c0_22] : memref<16x128xf32, #tpu.memory_space<vmem>>, vector<16x128xf32>
    tpu.vector_store %arg10[%c0_21, %c0_22], %22 {strides = array<i32>} : memref<16x128xf32, #tpu.memory_space<vmem>>, vector<16x128xf32>,
    return
  }
  func.func @transform_0(%arg0: i32) -> (i32, i32) {
    %c0_i32 = arith.constant 0 : i32
    %c0_i32_0 = arith.constant 0 : i32
    return %arg0, %c0_i32 : i32, i32
  }
  func.func @transform_1(%arg0: i32) -> (i32, i32) {
    %c0_i32 = arith.constant 0 : i32
    %c0_i32_0 = arith.constant 0 : i32
    %c0_i32_1 = arith.constant 0 : i32
    return %c0_i32, %c0_i32_0 : i32, i32
  }
  func.func @transform_2(%arg0: i32) -> (i32, i32) {
    %c0_i32 = arith.constant 0 : i32
    %c0_i32_0 = arith.constant 0 : i32
    %c0_i32_1 = arith.constant 0 : i32
    return %c0_i32, %c0_i32_0 : i32, i32
  }
  func.func @transform_3(%arg0: i32) -> (i32, i32) {
    %c0_i32 = arith.constant 0 : i32
    %c0_i32_0 = arith.constant 0 : i32
    %c0_i32_1 = arith.constant 0 : i32
    return %c0_i32, %c0_i32_0 : i32, i32
  }
  func.func @transform_4(%arg0: i32) -> (i32, i32) {
    %c0_i32 = arith.constant 0 : i32
    %c0_i32_0 = arith.constant 0 : i32
    %c0_i32_1 = arith.constant 0 : i32
    return %c0_i32, %c0_i32_0 : i32, i32
  }
  func.func @transform_5(%arg0: i32) -> (i32, i32) {
    %c0_i32 = arith.constant 0 : i32
    %c0_i32_0 = arith.constant 0 : i32
    %c0_i32_1 = arith.constant 0 : i32
    return %c0_i32, %c0_i32_0 : i32, i32
  }
  func.func @transform_6(%arg0: i32) -> (i32, i32) {
    %c0_i32 = arith.constant 0 : i32
    %c0_i32_0 = arith.constant 0 : i32
    %c0_i32_1 = arith.constant 0 : i32
    return %c0_i32, %c0_i32_0 : i32, i32
  }
  func.func @transform_7(%arg0: i32) -> (i32, i32) {
    %c0_i32 = arith.constant 0 : i32
    %c0_i32_0 = arith.constant 0 : i32
    %c0_i32_1 = arith.constant 0 : i32
    return %c0_i32, %c0_i32_0 : i32, i32
  }
  func.func @transform_8(%arg0: i32) -> (i32, i32) {
    %c0_i32 = arith.constant 0 : i32
    %c0_i32_0 = arith.constant 0 : i32
    %c0_i32_1 = arith.constant 0 : i32
    return %c0_i32, %c0_i32_0 : i32, i32
  }
  func.func @transform_9(%arg0: i32) -> (i32, i32) {
    %c0_i32 = arith.constant 0 : i32
    %c0_i32_0 = arith.constant 0 : i32
    return %arg0, %c0_i32 : i32, i32
  }
}

</mosaic_0001>

<llo_original>
// kernel: tpu_custom_call.1
$region0: #{tpu_custom_call.1}
  #allocation0 [shape = 'u32[]', space=smem, size = 0x4, offset = 0x4, fixed_abs, tag = 'smem constant byte address 0x4 - core index']
  #allocation1 [shape = 'u32[144,128]{1,0:T(1,128)}', space=vmem, size = 0x12000, scoped, tag = 'internal scratch']
  %s0 = inlined_call_operand.hbm [shape: f32[16,128], index: 0, kind: input, shape index: {}]
  %s1 = inlined_call_operand.hbm [shape: f32[128,128], index: 1, kind: input, shape index: {}]
  %s2 = inlined_call_operand.vmem [shape: f32[1,128], index: 2, kind: input, shape index: {}]
  %s3 = inlined_call_operand.hbm [shape: f32[128,128], index: 3, kind: input, shape index: {}]
  %s4 = inlined_call_operand.vmem [shape: f32[1,128], index: 4, kind: input, shape index: {}]
  %s5 = inlined_call_operand.hbm [shape: f32[128,128], index: 5, kind: input, shape index: {}]
  %s6 = inlined_call_operand.vmem [shape: f32[1,128], index: 6, kind: input, shape index: {}]
  %s7 = inlined_call_operand.hbm [shape: f32[128,128], index: 7, kind: input, shape index: {}]
  %s8 = inlined_call_operand.vmem [shape: f32[1,128], index: 8, kind: input, shape index: {}]
  %s9 = inlined_call_operand.hbm [shape: f32[16,128], index: 9, kind: output, shape index: {}]
  %s10 = sld [smem:[#allocation0]]
  $region66: #{tpu_custom_call.1} parent=0
    _
  %s12 = ssub.s32 1, %s10
  %s13 = scalar_select 0, %s12, %s10
  $region1: #{tpu_custom_call.1} parent=0
    #allocation2 [shape = 'u8[8192]{0}', space=vmem, size = 0x2000, scoped, tag = 'input window, operand 0, single buffered']
    #allocation3 [shape = 's32[1]{0}', space=sflag, size = 0x4, scoped, tag = 'scoped memory for tpu_custom_call.1']
    #allocation4 [shape = 's32[1]{0}', space=sflag, size = 0x4, scoped, tag = 'scoped memory for tpu_custom_call.1']
    #allocation5 [shape = 'u8[65536]{0}', space=vmem, size = 0x10000, scoped, tag = 'input window, operand 1, single buffered']
    #allocation6 [shape = 's32[1]{0}', space=sflag, size = 0x4, scoped, tag = 'scoped memory for tpu_custom_call.1']
    #allocation7 [shape = 'u8[65536]{0}', space=vmem, size = 0x10000, scoped, tag = 'input window, operand 3, single buffered']
    #allocation8 [shape = 'u8[65536]{0}', space=vmem, size = 0x10000, scoped, tag = 'input window, operand 5, single buffered']
    #allocation9 [shape = 's32[1]{0}', space=sflag, size = 0x4, scoped, tag = 'scoped memory for tpu_custom_call.1']
    #allocation10 [shape = 'u8[65536]{0}', space=vmem, size = 0x10000, scoped, tag = 'input window, operand 7, single buffered']
    #allocation11 [shape = 'u8[8192]{0}', space=vmem, size = 0x2000, scoped, tag = 'output window, operand 0, single buffered']
    %14 = vsyncpa [#allocation3], 0
    %15 = vsyncpa [#allocation6], 0
    %16 = vsyncpa [#allocation9], 0
    %17 = vsyncpa [#allocation4], 0
    // Predicated region
    $region2: #{tpu_custom_call.1} parent=1 // pred_check
      _
    $region3: #{tpu_custom_call.1} parent=1 // pred_check_branch
      %19 = sbr.rel (0) target = $region5
    $region4: #{tpu_custom_call.1} parent=1 // pred_region
      %s21 = ssub.s32 256, 256
      %22 = vsyncadd [#allocation3], %s21
      %s23 = sshll.u32 [#allocation2], 4
      %s24 = int_to_ptr.vmem [resolvable:$true] %s23
      %29 = dma.hbm_to_vmem [thread:$0]  %s0, 256, %s24, [#allocation3], 128, 128, 8
    $region5: #{tpu_custom_call.1} parent=1 // pred_fallthru
      _
    // Predicated region
    $region6: #{tpu_custom_call.1} parent=1 // pred_check
      _
    $region7: #{tpu_custom_call.1} parent=1 // pred_check_branch
      %31 = sbr.rel (0) target = $region9
    $region8: #{tpu_custom_call.1} parent=1 // pred_region
      %s33 = ssub.s32 2048, 2048
      %34 = vsyncadd [#allocation6], %s33
      %s35 = sshll.u32 [#allocation5], 4
      %s36 = int_to_ptr.vmem [resolvable:$true] %s35
      %41 = dma.hbm_to_vmem [thread:$0]  %s1, 2048, %s36, [#allocation6], 128, 128, 8
    $region9: #{tpu_custom_call.1} parent=1 // pred_fallthru
      _
    // Predicated region
    $region10: #{tpu_custom_call.1} parent=1 // pred_check
      _
    $region11: #{tpu_custom_call.1} parent=1 // pred_check_branch
      %43 = sbr.rel (0) target = $region13
    $region12: #{tpu_custom_call.1} parent=1 // pred_region
      _
    $region13: #{tpu_custom_call.1} parent=1 // pred_fallthru
      _
    // Predicated region
    $region14: #{tpu_custom_call.1} parent=1 // pred_check
      _
    $region15: #{tpu_custom_call.1} parent=1 // pred_check_branch
      %45 = sbr.rel (0) target = $region17
    $region16: #{tpu_custom_call.1} parent=1 // pred_region
      %s47 = ssub.s32 2048, 2048
      %48 = vsyncadd [#allocation6], %s47
      %s49 = sshll.u32 [#allocation7], 4
      %s50 = int_to_ptr.vmem [resolvable:$true] %s49
      %55 = dma.hbm_to_vmem [thread:$0]  %s3, 2048, %s50, [#allocation6], 128, 128, 8
    $region17: #{tpu_custom_call.1} parent=1 // pred_fallthru
      _
    // Predicated region
    $region18: #{tpu_custom_call.1} parent=1 // pred_check
      _
    $region19: #{tpu_custom_call.1} parent=1 // pred_check_branch
      %57 = sbr.rel (0) target = $region21
    $region20: #{tpu_custom_call.1} parent=1 // pred_region
      _
    $region21: #{tpu_custom_call.1} parent=1 // pred_fallthru
      _
    // Predicated region
    $region22: #{tpu_custom_call.1} parent=1 // pred_check
      _
    $region23: #{tpu_custom_call.1} parent=1 // pred_check_branch
      %59 = sbr.rel (0) target = $region25
    $region24: #{tpu_custom_call.1} parent=1 // pred_region
      %s61 = ssub.s32 2048, 2048
      %62 = vsyncadd [#allocation9], %s61
      %s63 = sshll.u32 [#allocation8], 4
      %s64 = int_to_ptr.vmem [resolvable:$true] %s63
      %69 = dma.hbm_to_vmem [thread:$0]  %s5, 2048, %s64, [#allocation9], 128, 128, 8
    $region25: #{tpu_custom_call.1} parent=1 // pred_fallthru
      _
    // Predicated region
    $region26: #{tpu_custom_call.1} parent=1 // pred_check
      _
    $region27: #{tpu_custom_call.1} parent=1 // pred_check_branch
      %71 = sbr.rel (0) target = $region29
    $region28: #{tpu_custom_call.1} parent=1 // pred_region
      _
    $region29: #{tpu_custom_call.1} parent=1 // pred_fallthru
      _
    // Predicated region
    $region30: #{tpu_custom_call.1} parent=1 // pred_check
      _
    $region31: #{tpu_custom_call.1} parent=1 // pred_check_branch
      %73 = sbr.rel (0) target = $region33
    $region32: #{tpu_custom_call.1} parent=1 // pred_region
      %s75 = ssub.s32 2048, 2048
      %76 = vsyncadd [#allocation9], %s75
      %s77 = sshll.u32 [#allocation10], 4
      %s78 = int_to_ptr.vmem [resolvable:$true] %s77
      %83 = dma.hbm_to_vmem [thread:$0]  %s7, 2048, %s78, [#allocation9], 128, 128, 8
    $region33: #{tpu_custom_call.1} parent=1 // pred_fallthru
      _
    // Predicated region
    $region34: #{tpu_custom_call.1} parent=1 // pred_check
      _
    $region35: #{tpu_custom_call.1} parent=1 // pred_check_branch
      %85 = sbr.rel (0) target = $region37
    $region36: #{tpu_custom_call.1} parent=1 // pred_region
      _
    $region37: #{tpu_custom_call.1} parent=1 // pred_fallthru
      _
    // Predicated region
    $region38: #{tpu_custom_call.1} parent=1 // pred_check
      _
    $region39: #{tpu_custom_call.1} parent=1 // pred_check_branch
      %87 = sbr.rel (0) target = $region41
    $region40: #{tpu_custom_call.1} parent=1 // pred_region
      %88 = dma.done [#allocation3], 256
    $region41: #{tpu_custom_call.1} parent=1 // pred_fallthru
      _
    // Predicated region
    $region42: #{tpu_custom_call.1} parent=1 // pred_check
      _
    $region43: #{tpu_custom_call.1} parent=1 // pred_check_branch
      %90 = sbr.rel (0) target = $region45
    $region44: #{tpu_custom_call.1} parent=1 // pred_region
      %91 = dma.done [#allocation6], 2048
    $region45: #{tpu_custom_call.1} parent=1 // pred_fallthru
      _
    // Predicated region
    $region46: #{tpu_custom_call.1} parent=1 // pred_check
      _
    $region47: #{tpu_custom_call.1} parent=1 // pred_check_branch
      %93 = sbr.rel (0) target = $region49
    $region48: #{tpu_custom_call.1} parent=1 // pred_region
      %94 = dma.done [#allocation6], 2048
    $region49: #{tpu_custom_call.1} parent=1 // pred_fallthru
      _
    // Predicated region
    $region50: #{tpu_custom_call.1} parent=1 // pred_check
      _
    $region51: #{tpu_custom_call.1} parent=1 // pred_check_branch
      %96 = sbr.rel (0) target = $region53
    $region52: #{tpu_custom_call.1} parent=1 // pred_region
      %97 = dma.done [#allocation9], 2048
    $region53: #{tpu_custom_call.1} parent=1 // pred_fallthru
      _
    // Predicated region
    $region54: #{tpu_custom_call.1} parent=1 // pred_check
      _
    $region55: #{tpu_custom_call.1} parent=1 // pred_check_branch
      %99 = sbr.rel (0) target = $region57
    $region56: #{tpu_custom_call.1} parent=1 // pred_region
      %100 = dma.done [#allocation9], 2048
    $region57: #{tpu_custom_call.1} parent=1 // pred_fallthru
      _
    %v101 = vld [vmem:[#allocation2] sm:$0xff]
    %v102 = vld [vmem:[#allocation2 + $0x8] sm:$0xff]
    %v103 = vld [vmem:[#allocation5] sm:$0xff]
    %v104 = vld [vmem:[#allocation5 + $0x8] sm:$0xff]
    %v105 = vld [vmem:[#allocation5 + $0x10] sm:$0xff]
    %v106 = vld [vmem:[#allocation5 + $0x18] sm:$0xff]
    %v107 = vld [vmem:[#allocation5 + $0x20] sm:$0xff]
    %v108 = vld [vmem:[#allocation5 + $0x28] sm:$0xff]
    %v109 = vld [vmem:[#allocation5 + $0x30] sm:$0xff]
    %v110 = vld [vmem:[#allocation5 + $0x38] sm:$0xff]
    %v111 = vld [vmem:[#allocation5 + $0x40] sm:$0xff]
    %v112 = vld [vmem:[#allocation5 + $0x48] sm:$0xff]
    %v113 = vld [vmem:[#allocation5 + $0x50] sm:$0xff]
    %v114 = vld [vmem:[#allocation5 + $0x58] sm:$0xff]
    %v115 = vld [vmem:[#allocation5 + $0x60] sm:$0xff]
    %v116 = vld [vmem:[#allocation5 + $0x68] sm:$0xff]
    %v117 = vld [vmem:[#allocation5 + $0x70] sm:$0xff]
    %v118 = vld [vmem:[#allocation5 + $0x78] sm:$0xff]
    %v119 = vld [vmem:[%s2] sm:$0x1]
    %v121 = vlaneseq
    %v122 = vshrl.u32 %v121, 7
    %v123 = vsub.s32 0, %v122
    %v124 = vrot.slane %v119, %v123
    %126 = vmatprep.subr.mxu0 0.0
    %127 = vmatpush1.msra.mxu0 %v103
    %128 = vmatprep.subr.mxu0 0.0
    %129 = vmatpush1.msra.mxu0 %v104
    %130 = vmatprep.subr.mxu0 0.0
    %131 = vmatpush1.msra.mxu0 %v105
    %132 = vmatprep.subr.mxu0 0.0
    %133 = vmatpush1.msra.mxu0 %v106
    %134 = vmatprep.subr.mxu0 0.0
    %135 = vmatpush1.msra.mxu0 %v107
    %136 = vmatprep.subr.mxu0 0.0
    %137 = vmatpush1.msra.mxu0 %v108
    %138 = vmatprep.subr.mxu0 0.0
    %139 = vmatpush1.msra.mxu0 %v109
    %140 = vmatprep.subr.mxu0 0.0
    %141 = vmatpush1.msra.mxu0 %v110
    %142 = vmatprep.subr.mxu0 0.0
    %143 = vmatpush1.msra.mxu0 %v111
    %144 = vmatprep.subr.mxu0 0.0
    %145 = vmatpush1.msra.mxu0 %v112
    %146 = vmatprep.subr.mxu0 0.0
    %147 = vmatpush1.msra.mxu0 %v113
    %148 = vmatprep.subr.mxu0 0.0
    %149 = vmatpush1.msra.mxu0 %v114
    %150 = vmatprep.subr.mxu0 0.0
    %151 = vmatpush1.msra.mxu0 %v115
    %152 = vmatprep.subr.mxu0 0.0
    %153 = vmatpush1.msra.mxu0 %v116
    %154 = vmatprep.subr.mxu0 0.0
    %155 = vmatpush1.msra.mxu0 %v117
    %156 = vmatprep.subr.mxu0 0.0
    %157 = vmatpush1.msra.mxu0 %v118
    %158 = vmatprep.subr.mxu0 0.0
    %159 = vmatpush1.msra.mxu0 0.0
    %160 = vmatprep.subr.mxu0 0.0
    %161 = vmatpush1.msra.mxu0 0.0
    %162 = vmatprep.subr.mxu0 0.0
    %163 = vmatpush1.msra.mxu0 0.0
    %164 = vmatprep.subr.mxu0 0.0
    %165 = vmatpush1.msra.mxu0 0.0
    %166 = vmatprep.subr.mxu0 0.0
    %167 = vmatpush1.msra.mxu0 0.0
    %168 = vmatprep.subr.mxu0 0.0
    %169 = vmatpush1.msra.mxu0 0.0
    %170 = vmatprep.subr.mxu0 0.0
    %171 = vmatpush1.msra.mxu0 0.0
    %172 = vmatprep.subr.mxu0 0.0
    %173 = vmatpush1.msra.mxu0 0.0
    %174 = vmatprep.subr.mxu0 0.0
    %175 = vmatpush1.msra.mxu0 0.0
    %176 = vmatprep.subr.mxu0 0.0
    %177 = vmatpush1.msra.mxu0 0.0
    %178 = vmatprep.subr.mxu0 0.0
    %179 = vmatpush1.msra.mxu0 0.0
    %180 = vmatprep.subr.mxu0 0.0
    %181 = vmatpush1.msra.mxu0 0.0
    %182 = vmatprep.subr.mxu0 0.0
    %183 = vmatpush1.msra.mxu0 0.0
    %184 = vmatprep.subr.mxu0 0.0
    %185 = vmatpush1.msra.mxu0 0.0
    %186 = vmatprep.subr.mxu0 0.0
    %187 = vmatpush1.msra.mxu0 0.0
    %188 = vmatprep.subr.mxu0 0.0
    %189 = vmatpush1.msra.mxu0 0.0
    %190 = vmatprep.mubr.f32.mxu0 0.0
    %191 = vmatmul.mubr.f32.gmra.mrb[0].mxu0 %v101
    %v192 = vpop.f32.mrb[0].mxu0
    %v193 = vadd.f32 %v124, %v192
    %v194 = vpop.f32.mrb[0].mxu0
    %195 = vmatprep.mubr.f32.mxu0 0.0
    %196 = vmatmul.mubr.f32.gmra.mrb[0].mxu0 %v102
    %v197 = vpop.f32.mrb[0].mxu0
    %v198 = vadd.f32 %v124, %v197
    %v199 = vpop.f32.mrb[0].mxu0
    %200 = vdwg.mxu0
    %v201 = vld [vmem:[#allocation7] sm:$0xff]
    %v202 = vld [vmem:[#allocation7 + $0x8] sm:$0xff]
    %v203 = vld [vmem:[#allocation7 + $0x10] sm:$0xff]
    %v204 = vld [vmem:[#allocation7 + $0x18] sm:$0xff]
    %v205 = vld [vmem:[#allocation7 + $0x20] sm:$0xff]
    %v206 = vld [vmem:[#allocation7 + $0x28] sm:$0xff]
    %v207 = vld [vmem:[#allocation7 + $0x30] sm:$0xff]
    %v208 = vld [vmem:[#allocation7 + $0x38] sm:$0xff]
    %v209 = vld [vmem:[#allocation7 + $0x40] sm:$0xff]
    %v210 = vld [vmem:[#allocation7 + $0x48] sm:$0xff]
    %v211 = vld [vmem:[#allocation7 + $0x50] sm:$0xff]
    %v212 = vld [vmem:[#allocation7 + $0x58] sm:$0xff]
    %v213 = vld [vmem:[#allocation7 + $0x60] sm:$0xff]
    %v214 = vld [vmem:[#allocation7 + $0x68] sm:$0xff]
    %v215 = vld [vmem:[#allocation7 + $0x70] sm:$0xff]
    %v216 = vld [vmem:[#allocation7 + $0x78] sm:$0xff]
    %v217 = vld [vmem:[%s4] sm:$0x1]
    %v219 = vlaneseq
    %v220 = vshrl.u32 %v219, 7
    %v221 = vsub.s32 0, %v220
    %v222 = vrot.slane %v217, %v221
    %224 = vmatprep.subr.mxu0 0.0
    %225 = vmatpush1.msra.mxu0 %v201
    %226 = vmatprep.subr.mxu0 0.0
    %227 = vmatpush1.msra.mxu0 %v202
    %228 = vmatprep.subr.mxu0 0.0
    %229 = vmatpush1.msra.mxu0 %v203
    %230 = vmatprep.subr.mxu0 0.0
    %231 = vmatpush1.msra.mxu0 %v204
    %232 = vmatprep.subr.mxu0 0.0
    %233 = vmatpush1.msra.mxu0 %v205
    %234 = vmatprep.subr.mxu0 0.0
    %235 = vmatpush1.msra.mxu0 %v206
    %236 = vmatprep.subr.mxu0 0.0
    %237 = vmatpush1.msra.mxu0 %v207
    %238 = vmatprep.subr.mxu0 0.0
    %239 = vmatpush1.msra.mxu0 %v208
    %240 = vmatprep.subr.mxu0 0.0
    %241 = vmatpush1.msra.mxu0 %v209
    %242 = vmatprep.subr.mxu0 0.0
    %243 = vmatpush1.msra.mxu0 %v210
    %244 = vmatprep.subr.mxu0 0.0
    %245 = vmatpush1.msra.mxu0 %v211
    %246 = vmatprep.subr.mxu0 0.0
    %247 = vmatpush1.msra.mxu0 %v212
    %248 = vmatprep.subr.mxu0 0.0
    %249 = vmatpush1.msra.mxu0 %v213
    %250 = vmatprep.subr.mxu0 0.0
    %251 = vmatpush1.msra.mxu0 %v214
    %252 = vmatprep.subr.mxu0 0.0
    %253 = vmatpush1.msra.mxu0 %v215
    %254 = vmatprep.subr.mxu0 0.0
    %255 = vmatpush1.msra.mxu0 %v216
    %256 = vmatprep.subr.mxu0 0.0
    %257 = vmatpush1.msra.mxu0 0.0
    %258 = vmatprep.subr.mxu0 0.0
    %259 = vmatpush1.msra.mxu0 0.0
    %260 = vmatprep.subr.mxu0 0.0
    %261 = vmatpush1.msra.mxu0 0.0
    %262 = vmatprep.subr.mxu0 0.0
    %263 = vmatpush1.msra.mxu0 0.0
    %264 = vmatprep.subr.mxu0 0.0
    %265 = vmatpush1.msra.mxu0 0.0
    %266 = vmatprep.subr.mxu0 0.0
    %267 = vmatpush1.msra.mxu0 0.0
    %268 = vmatprep.subr.mxu0 0.0
    %269 = vmatpush1.msra.mxu0 0.0
    %270 = vmatprep.subr.mxu0 0.0
    %271 = vmatpush1.msra.mxu0 0.0
    %272 = vmatprep.subr.mxu0 0.0
    %273 = vmatpush1.msra.mxu0 0.0
    %274 = vmatprep.subr.mxu0 0.0
    %275 = vmatpush1.msra.mxu0 0.0
    %276 = vmatprep.subr.mxu0 0.0
    %277 = vmatpush1.msra.mxu0 0.0
    %278 = vmatprep.subr.mxu0 0.0
    %279 = vmatpush1.msra.mxu0 0.0
    %280 = vmatprep.subr.mxu0 0.0
    %281 = vmatpush1.msra.mxu0 0.0
    %282 = vmatprep.subr.mxu0 0.0
    %283 = vmatpush1.msra.mxu0 0.0
    %284 = vmatprep.subr.mxu0 0.0
    %285 = vmatpush1.msra.mxu0 0.0
    %286 = vmatprep.subr.mxu0 0.0
    %287 = vmatpush1.msra.mxu0 0.0
    %288 = vmatprep.mubr.f32.mxu0 0.0
    %289 = vmatmul.mubr.f32.gmra.mrb[0].mxu0 %v193
    %v290 = vpop.f32.mrb[0].mxu0
    %v291 = vadd.f32 %v222, %v290
    %v292 = vpop.f32.mrb[0].mxu0
    %293 = vmatprep.mubr.f32.mxu0 0.0
    %294 = vmatmul.mubr.f32.gmra.mrb[0].mxu0 %v198
    %v295 = vpop.f32.mrb[0].mxu0
    %v296 = vadd.f32 %v222, %v295
    %v297 = vpop.f32.mrb[0].mxu0
    %298 = vdwg.mxu0
    %v299 = vmax.f32 %v291, 0.0
    %v300 = vmax.f32 %v296, 0.0
    %v301 = vld [vmem:[#allocation8] sm:$0xff]
    %v302 = vld [vmem:[#allocation8 + $0x8] sm:$0xff]
    %v303 = vld [vmem:[#allocation8 + $0x10] sm:$0xff]
    %v304 = vld [vmem:[#allocation8 + $0x18] sm:$0xff]
    %v305 = vld [vmem:[#allocation8 + $0x20] sm:$0xff]
    %v306 = vld [vmem:[#allocation8 + $0x28] sm:$0xff]
    %v307 = vld [vmem:[#allocation8 + $0x30] sm:$0xff]
    %v308 = vld [vmem:[#allocation8 + $0x38] sm:$0xff]
    %v309 = vld [vmem:[#allocation8 + $0x40] sm:$0xff]
    %v310 = vld [vmem:[#allocation8 + $0x48] sm:$0xff]
    %v311 = vld [vmem:[#allocation8 + $0x50] sm:$0xff]
    %v312 = vld [vmem:[#allocation8 + $0x58] sm:$0xff]
    %v313 = vld [vmem:[#allocation8 + $0x60] sm:$0xff]
    %v314 = vld [vmem:[#allocation8 + $0x68] sm:$0xff]
    %v315 = vld [vmem:[#allocation8 + $0x70] sm:$0xff]
    %v316 = vld [vmem:[#allocation8 + $0x78] sm:$0xff]
    %v317 = vld [vmem:[%s6] sm:$0x1]
    %v319 = vlaneseq
    %v320 = vshrl.u32 %v319, 7
    %v321 = vsub.s32 0, %v320
    %v322 = vrot.slane %v317, %v321
    %324 = vmatprep.subr.mxu0 0.0
    %325 = vmatpush1.msra.mxu0 %v301
    %326 = vmatprep.subr.mxu0 0.0
    %327 = vmatpush1.msra.mxu0 %v302
    %328 = vmatprep.subr.mxu0 0.0
    %329 = vmatpush1.msra.mxu0 %v303
    %330 = vmatprep.subr.mxu0 0.0
    %331 = vmatpush1.msra.mxu0 %v304
    %332 = vmatprep.subr.mxu0 0.0
    %333 = vmatpush1.msra.mxu0 %v305
    %334 = vmatprep.subr.mxu0 0.0
    %335 = vmatpush1.msra.mxu0 %v306
    %336 = vmatprep.subr.mxu0 0.0
    %337 = vmatpush1.msra.mxu0 %v307
    %338 = vmatprep.subr.mxu0 0.0
    %339 = vmatpush1.msra.mxu0 %v308
    %340 = vmatprep.subr.mxu0 0.0
    %341 = vmatpush1.msra.mxu0 %v309
    %342 = vmatprep.subr.mxu0 0.0
    %343 = vmatpush1.msra.mxu0 %v310
    %344 = vmatprep.subr.mxu0 0.0
    %345 = vmatpush1.msra.mxu0 %v311
    %346 = vmatprep.subr.mxu0 0.0
    %347 = vmatpush1.msra.mxu0 %v312
    %348 = vmatprep.subr.mxu0 0.0
    %349 = vmatpush1.msra.mxu0 %v313
    %350 = vmatprep.subr.mxu0 0.0
    %351 = vmatpush1.msra.mxu0 %v314
    %352 = vmatprep.subr.mxu0 0.0
    %353 = vmatpush1.msra.mxu0 %v315
    %354 = vmatprep.subr.mxu0 0.0
    %355 = vmatpush1.msra.mxu0 %v316
    %356 = vmatprep.subr.mxu0 0.0
    %357 = vmatpush1.msra.mxu0 0.0
    %358 = vmatprep.subr.mxu0 0.0
    %359 = vmatpush1.msra.mxu0 0.0
    %360 = vmatprep.subr.mxu0 0.0
    %361 = vmatpush1.msra.mxu0 0.0
    %362 = vmatprep.subr.mxu0 0.0
    %363 = vmatpush1.msra.mxu0 0.0
    %364 = vmatprep.subr.mxu0 0.0
    %365 = vmatpush1.msra.mxu0 0.0
    %366 = vmatprep.subr.mxu0 0.0
    %367 = vmatpush1.msra.mxu0 0.0
    %368 = vmatprep.subr.mxu0 0.0
    %369 = vmatpush1.msra.mxu0 0.0
    %370 = vmatprep.subr.mxu0 0.0
    %371 = vmatpush1.msra.mxu0 0.0
    %372 = vmatprep.subr.mxu0 0.0
    %373 = vmatpush1.msra.mxu0 0.0
    %374 = vmatprep.subr.mxu0 0.0
    %375 = vmatpush1.msra.mxu0 0.0
    %376 = vmatprep.subr.mxu0 0.0
    %377 = vmatpush1.msra.mxu0 0.0
    %378 = vmatprep.subr.mxu0 0.0
    %379 = vmatpush1.msra.mxu0 0.0
    %380 = vmatprep.subr.mxu0 0.0
    %381 = vmatpush1.msra.mxu0 0.0
    %382 = vmatprep.subr.mxu0 0.0
    %383 = vmatpush1.msra.mxu0 0.0
    %384 = vmatprep.subr.mxu0 0.0
    %385 = vmatpush1.msra.mxu0 0.0
    %386 = vmatprep.subr.mxu0 0.0
    %387 = vmatpush1.msra.mxu0 0.0
    %388 = vmatprep.mubr.f32.mxu0 0.0
    %389 = vmatmul.mubr.f32.gmra.mrb[0].mxu0 %v299
    %v390 = vpop.f32.mrb[0].mxu0
    %v391 = vadd.f32 %v322, %v390
    %v392 = vpop.f32.mrb[0].mxu0
    %393 = vmatprep.mubr.f32.mxu0 0.0
    %394 = vmatmul.mubr.f32.gmra.mrb[0].mxu0 %v300
    %v395 = vpop.f32.mrb[0].mxu0
    %v396 = vadd.f32 %v322, %v395
    %v397 = vpop.f32.mrb[0].mxu0
    %398 = vdwg.mxu0
    %v399 = vld [vmem:[#allocation10] sm:$0xff]
    %v400 = vld [vmem:[#allocation10 + $0x8] sm:$0xff]
    %v401 = vld [vmem:[#allocation10 + $0x10] sm:$0xff]
    %v402 = vld [vmem:[#allocation10 + $0x18] sm:$0xff]
    %v403 = vld [vmem:[#allocation10 + $0x20] sm:$0xff]
    %v404 = vld [vmem:[#allocation10 + $0x28] sm:$0xff]
    %v405 = vld [vmem:[#allocation10 + $0x30] sm:$0xff]
    %v406 = vld [vmem:[#allocation10 + $0x38] sm:$0xff]
    %v407 = vld [vmem:[#allocation10 + $0x40] sm:$0xff]
    %v408 = vld [vmem:[#allocation10 + $0x48] sm:$0xff]
    %v409 = vld [vmem:[#allocation10 + $0x50] sm:$0xff]
    %v410 = vld [vmem:[#allocation10 + $0x58] sm:$0xff]
    %v411 = vld [vmem:[#allocation10 + $0x60] sm:$0xff]
    %v412 = vld [vmem:[#allocation10 + $0x68] sm:$0xff]
    %v413 = vld [vmem:[#allocation10 + $0x70] sm:$0xff]
    %v414 = vld [vmem:[#allocation10 + $0x78] sm:$0xff]
    %v415 = vld [vmem:[%s8] sm:$0x1]
    %v417 = vlaneseq
    %v418 = vshrl.u32 %v417, 7
    %v419 = vsub.s32 0, %v418
    %v420 = vrot.slane %v415, %v419
    %422 = vmatprep.subr.mxu0 0.0
    %423 = vmatpush1.msra.mxu0 %v399
    %424 = vmatprep.subr.mxu0 0.0
    %425 = vmatpush1.msra.mxu0 %v400
    %426 = vmatprep.subr.mxu0 0.0
    %427 = vmatpush1.msra.mxu0 %v401
    %428 = vmatprep.subr.mxu0 0.0
    %429 = vmatpush1.msra.mxu0 %v402
    %430 = vmatprep.subr.mxu0 0.0
    %431 = vmatpush1.msra.mxu0 %v403
    %432 = vmatprep.subr.mxu0 0.0
    %433 = vmatpush1.msra.mxu0 %v404
    %434 = vmatprep.subr.mxu0 0.0
    %435 = vmatpush1.msra.mxu0 %v405
    %436 = vmatprep.subr.mxu0 0.0
    %437 = vmatpush1.msra.mxu0 %v406
    %438 = vmatprep.subr.mxu0 0.0
    %439 = vmatpush1.msra.mxu0 %v407
    %440 = vmatprep.subr.mxu0 0.0
    %441 = vmatpush1.msra.mxu0 %v408
    %442 = vmatprep.subr.mxu0 0.0
    %443 = vmatpush1.msra.mxu0 %v409
    %444 = vmatprep.subr.mxu0 0.0
    %445 = vmatpush1.msra.mxu0 %v410
    %446 = vmatprep.subr.mxu0 0.0
    %447 = vmatpush1.msra.mxu0 %v411
    %448 = vmatprep.subr.mxu0 0.0
    %449 = vmatpush1.msra.mxu0 %v412
    %450 = vmatprep.subr.mxu0 0.0
    %451 = vmatpush1.msra.mxu0 %v413
    %452 = vmatprep.subr.mxu0 0.0
    %453 = vmatpush1.msra.mxu0 %v414
    %454 = vmatprep.subr.mxu0 0.0
    %455 = vmatpush1.msra.mxu0 0.0
    %456 = vmatprep.subr.mxu0 0.0
    %457 = vmatpush1.msra.mxu0 0.0
    %458 = vmatprep.subr.mxu0 0.0
    %459 = vmatpush1.msra.mxu0 0.0
    %460 = vmatprep.subr.mxu0 0.0
    %461 = vmatpush1.msra.mxu0 0.0
    %462 = vmatprep.subr.mxu0 0.0
    %463 = vmatpush1.msra.mxu0 0.0
    %464 = vmatprep.subr.mxu0 0.0
    %465 = vmatpush1.msra.mxu0 0.0
    %466 = vmatprep.subr.mxu0 0.0
    %467 = vmatpush1.msra.mxu0 0.0
    %468 = vmatprep.subr.mxu0 0.0
    %469 = vmatpush1.msra.mxu0 0.0
    %470 = vmatprep.subr.mxu0 0.0
    %471 = vmatpush1.msra.mxu0 0.0
    %472 = vmatprep.subr.mxu0 0.0
    %473 = vmatpush1.msra.mxu0 0.0
    %474 = vmatprep.subr.mxu0 0.0
    %475 = vmatpush1.msra.mxu0 0.0
    %476 = vmatprep.subr.mxu0 0.0
    %477 = vmatpush1.msra.mxu0 0.0
    %478 = vmatprep.subr.mxu0 0.0
    %479 = vmatpush1.msra.mxu0 0.0
    %480 = vmatprep.subr.mxu0 0.0
    %481 = vmatpush1.msra.mxu0 0.0
    %482 = vmatprep.subr.mxu0 0.0
    %483 = vmatpush1.msra.mxu0 0.0
    %484 = vmatprep.subr.mxu0 0.0
    %485 = vmatpush1.msra.mxu0 0.0
    %486 = vmatprep.mubr.f32.mxu0 0.0
    %487 = vmatmul.mubr.f32.gmra.mrb[0].mxu0 %v391
    %v488 = vpop.f32.mrb[0].mxu0
    %v489 = vadd.f32 %v420, %v488
    %v490 = vpop.f32.mrb[0].mxu0
    %491 = vmatprep.mubr.f32.mxu0 0.0
    %492 = vmatmul.mubr.f32.gmra.mrb[0].mxu0 %v396
    %v493 = vpop.f32.mrb[0].mxu0
    %v494 = vadd.f32 %v420, %v493
    %v495 = vpop.f32.mrb[0].mxu0
    %496 = vdwg.mxu0
    %497 = vst [vmem:[#allocation11] sm:$0xff] %v489
    %498 = vst [vmem:[#allocation11 + $0x8] sm:$0xff] %v494
    // Predicated region
    $region58: #{tpu_custom_call.1} parent=1 // pred_check
      _
    $region59: #{tpu_custom_call.1} parent=1 // pred_check_branch
      %500 = sbr.rel (0) target = $region61
    $region60: #{tpu_custom_call.1} parent=1 // pred_region
      %s502 = ssub.s32 256, 256
      %503 = vsyncadd [#allocation4], %s502
      %s504 = sshll.u32 [#allocation11], 4
      %s505 = int_to_ptr.vmem [resolvable:$true] %s504
      %510 = dma.vmem_to_hbm [thread:$0]  %s505, 256, %s9, [#allocation4], 128, 128, 8
    $region61: #{tpu_custom_call.1} parent=1 // pred_fallthru
      _
    // Predicated region
    $region62: #{tpu_custom_call.1} parent=1 // pred_check
      _
    $region63: #{tpu_custom_call.1} parent=1 // pred_check_branch
      %512 = sbr.rel (0) target = $region65
    $region64: #{tpu_custom_call.1} parent=1 // pred_region
      %513 = dma.done [#allocation4], 256
    $region65: #{tpu_custom_call.1} parent=1 // pred_fallthru
      _
    %514 = vsyncpa [#allocation3], 1
    %515 = vsyncpa [#allocation6], 1
    %516 = vsyncpa [#allocation9], 1
    %517 = vsyncpa [#allocation4], 1

// kernel: tpu_custom_call.1
$region0: #{tpu_custom_call.1}
  #allocation0 [shape = 'u32[]', space=smem, size = 0x4, offset = 0x4, fixed_abs, tag = 'smem constant byte address 0x4 - core index']
  #allocation1 [shape = 'u32[144,128]{1,0:T(1,128)}', space=vmem, size = 0x12000, scoped, tag = 'internal scratch']
  %s0 = inlined_call_operand.hbm [shape: f32[16,128], index: 0, kind: input, shape index: {}]
  %s1 = inlined_call_operand.hbm [shape: f32[128,128], index: 1, kind: input, shape index: {}]
  %s2 = inlined_call_operand.vmem [shape: f32[1,128], index: 2, kind: input, shape index: {}]
  %s3 = inlined_call_operand.hbm [shape: f32[128,128], index: 3, kind: input, shape index: {}]
  %s4 = inlined_call_operand.vmem [shape: f32[1,128], index: 4, kind: input, shape index: {}]
  %s5 = inlined_call_operand.hbm [shape: f32[128,128], index: 5, kind: input, shape index: {}]
  %s6 = inlined_call_operand.vmem [shape: f32[1,128], index: 6, kind: input, shape index: {}]
  %s7 = inlined_call_operand.hbm [shape: f32[128,128], index: 7, kind: input, shape index: {}]
  %s8 = inlined_call_operand.vmem [shape: f32[1,128], index: 8, kind: input, shape index: {}]
  %s9 = inlined_call_operand.hbm [shape: f32[16,128], index: 9, kind: output, shape index: {}]
  %s10 = sld [smem:[#allocation0]]
  $region66: #{tpu_custom_call.1} parent=0
    _
  %s12 = ssub.s32 1, %s10
  %s13 = scalar_select 0, %s12, %s10
  $region1: #{tpu_custom_call.1} parent=0
    #allocation2 [shape = 'u8[8192]{0}', space=vmem, size = 0x2000, scoped, tag = 'input window, operand 0, single buffered']
    #allocation3 [shape = 's32[1]{0}', space=sflag, size = 0x4, scoped, tag = 'scoped memory for tpu_custom_call.1']
    #allocation4 [shape = 's32[1]{0}', space=sflag, size = 0x4, scoped, tag = 'scoped memory for tpu_custom_call.1']
    #allocation5 [shape = 'u8[65536]{0}', space=vmem, size = 0x10000, scoped, tag = 'input window, operand 1, single buffered']
    #allocation6 [shape = 's32[1]{0}', space=sflag, size = 0x4, scoped, tag = 'scoped memory for tpu_custom_call.1']
    #allocation7 [shape = 'u8[65536]{0}', space=vmem, size = 0x10000, scoped, tag = 'input window, operand 3, single buffered']
    #allocation8 [shape = 'u8[65536]{0}', space=vmem, size = 0x10000, scoped, tag = 'input window, operand 5, single buffered']
    #allocation9 [shape = 's32[1]{0}', space=sflag, size = 0x4, scoped, tag = 'scoped memory for tpu_custom_call.1']
    #allocation10 [shape = 'u8[65536]{0}', space=vmem, size = 0x10000, scoped, tag = 'input window, operand 7, single buffered']
    #allocation11 [shape = 'u8[8192]{0}', space=vmem, size = 0x2000, scoped, tag = 'output window, operand 0, single buffered']
    %14 = vsyncpa [#allocation3], 0
    %15 = vsyncpa [#allocation6], 0
    %16 = vsyncpa [#allocation9], 0
    %17 = vsyncpa [#allocation4], 0
    // Predicated region
    $region2: #{tpu_custom_call.1} parent=1 // pred_check
      _
    $region3: #{tpu_custom_call.1} parent=1 // pred_check_branch
      %19 = sbr.rel (0) target = $region5
    $region4: #{tpu_custom_call.1} parent=1 // pred_region
      %s21 = ssub.s32 256, 256
      %22 = vsyncadd [#allocation3], %s21
      %s23 = sshll.u32 [#allocation2], 4
      %s24 = int_to_ptr.vmem [resolvable:$true] %s23
      %29 = dma.hbm_to_vmem [thread:$0]  %s0, 256, %s24, [#allocation3], 128, 128, 8
    $region5: #{tpu_custom_call.1} parent=1 // pred_fallthru
      _
    // Predicated region
    $region6: #{tpu_custom_call.1} parent=1 // pred_check
      _
    $region7: #{tpu_custom_call.1} parent=1 // pred_check_branch
      %31 = sbr.rel (0) target = $region9
    $region8: #{tpu_custom_call.1} parent=1 // pred_region
      %s33 = ssub.s32 2048, 2048
      %34 = vsyncadd [#allocation6], %s33
      %s35 = sshll.u32 [#allocation5], 4
      %s36 = int_to_ptr.vmem [resolvable:$true] %s35
      %41 = dma.hbm_to_vmem [thread:$0]  %s1, 2048, %s36, [#allocation6], 128, 128, 8
    $region9: #{tpu_custom_call.1} parent=1 // pred_fallthru
      _
    // Predicated region
    $region10: #{tpu_custom_call.1} parent=1 // pred_check
      _
    $region11: #{tpu_custom_call.1} parent=1 // pred_check_branch
      %43 = sbr.rel (0) target = $region13
    $region12: #{tpu_custom_call.1} parent=1 // pred_region
      _
    $region13: #{tpu_custom_call.1} parent=1 // pred_fallthru
      _
    // Predicated region
    $region14: #{tpu_custom_call.1} parent=1 // pred_check
      _
    $region15: #{tpu_custom_call.1} parent=1 // pred_check_branch
      %45 = sbr.rel (0) target = $region17
    $region16: #{tpu_custom_call.1} parent=1 // pred_region
      %s47 = ssub.s32 2048, 2048
      %48 = vsyncadd [#allocation6], %s47
      %s49 = sshll.u32 [#allocation7], 4
      %s50 = int_to_ptr.vmem [resolvable:$true] %s49
      %55 = dma.hbm_to_vmem [thread:$0]  %s3, 2048, %s50, [#allocation6], 128, 128, 8
    $region17: #{tpu_custom_call.1} parent=1 // pred_fallthru
      _
    // Predicated region
    $region18: #{tpu_custom_call.1} parent=1 // pred_check
      _
    $region19: #{tpu_custom_call.1} parent=1 // pred_check_branch
      %57 = sbr.rel (0) target = $region21
    $region20: #{tpu_custom_call.1} parent=1 // pred_region
      _
    $region21: #{tpu_custom_call.1} parent=1 // pred_fallthru
      _
    // Predicated region
    $region22: #{tpu_custom_call.1} parent=1 // pred_check
      _
    $region23: #{tpu_custom_call.1} parent=1 // pred_check_branch
      %59 = sbr.rel (0) target = $region25
    $region24: #{tpu_custom_call.1} parent=1 // pred_region
      %s61 = ssub.s32 2048, 2048
      %62 = vsyncadd [#allocation9], %s61
      %s63 = sshll.u32 [#allocation8], 4
      %s64 = int_to_ptr.vmem [resolvable:$true] %s63
      %69 = dma.hbm_to_vmem [thread:$0]  %s5, 2048, %s64, [#allocation9], 128, 128, 8
    $region25: #{tpu_custom_call.1} parent=1 // pred_fallthru
      _
    // Predicated region
    $region26: #{tpu_custom_call.1} parent=1 // pred_check
      _
    $region27: #{tpu_custom_call.1} parent=1 // pred_check_branch
      %71 = sbr.rel (0) target = $region29
    $region28: #{tpu_custom_call.1} parent=1 // pred_region
      _
    $region29: #{tpu_custom_call.1} parent=1 // pred_fallthru
      _
    // Predicated region
    $region30: #{tpu_custom_call.1} parent=1 // pred_check
      _
    $region31: #{tpu_custom_call.1} parent=1 // pred_check_branch
      %73 = sbr.rel (0) target = $region33
    $region32: #{tpu_custom_call.1} parent=1 // pred_region
      %s75 = ssub.s32 2048, 2048
      %76 = vsyncadd [#allocation9], %s75
      %s77 = sshll.u32 [#allocation10], 4
      %s78 = int_to_ptr.vmem [resolvable:$true] %s77
      %83 = dma.hbm_to_vmem [thread:$0]  %s7, 2048, %s78, [#allocation9], 128, 128, 8
    $region33: #{tpu_custom_call.1} parent=1 // pred_fallthru
      _
    // Predicated region
    $region34: #{tpu_custom_call.1} parent=1 // pred_check
      _
    $region35: #{tpu_custom_call.1} parent=1 // pred_check_branch
      %85 = sbr.rel (0) target = $region37
    $region36: #{tpu_custom_call.1} parent=1 // pred_region
      _
    $region37: #{tpu_custom_call.1} parent=1 // pred_fallthru
      _
    // Predicated region
    $region38: #{tpu_custom_call.1} parent=1 // pred_check
      _
    $region39: #{tpu_custom_call.1} parent=1 // pred_check_branch
      %87 = sbr.rel (0) target = $region41
    $region40: #{tpu_custom_call.1} parent=1 // pred_region
      %88 = dma.done [#allocation3], 256
    $region41: #{tpu_custom_call.1} parent=1 // pred_fallthru
      _
    // Predicated region
    $region42: #{tpu_custom_call.1} parent=1 // pred_check
      _
    $region43: #{tpu_custom_call.1} parent=1 // pred_check_branch
      %90 = sbr.rel (0) target = $region45
    $region44: #{tpu_custom_call.1} parent=1 // pred_region
      %91 = dma.done [#allocation6], 2048
    $region45: #{tpu_custom_call.1} parent=1 // pred_fallthru
      _
    // Predicated region
    $region46: #{tpu_custom_call.1} parent=1 // pred_check
      _
    $region47: #{tpu_custom_call.1} parent=1 // pred_check_branch
      %93 = sbr.rel (0) target = $region49
    $region48: #{tpu_custom_call.1} parent=1 // pred_region
      %94 = dma.done [#allocation6], 2048
    $region49: #{tpu_custom_call.1} parent=1 // pred_fallthru
      _
    // Predicated region
    $region50: #{tpu_custom_call.1} parent=1 // pred_check
      _
    $region51: #{tpu_custom_call.1} parent=1 // pred_check_branch
      %96 = sbr.rel (0) target = $region53
    $region52: #{tpu_custom_call.1} parent=1 // pred_region
      %97 = dma.done [#allocation9], 2048
    $region53: #{tpu_custom_call.1} parent=1 // pred_fallthru
      _
    // Predicated region
    $region54: #{tpu_custom_call.1} parent=1 // pred_check
      _
    $region55: #{tpu_custom_call.1} parent=1 // pred_check_branch
      %99 = sbr.rel (0) target = $region57
    $region56: #{tpu_custom_call.1} parent=1 // pred_region
      %100 = dma.done [#allocation9], 2048
    $region57: #{tpu_custom_call.1} parent=1 // pred_fallthru
      _
    %v101 = vld [vmem:[#allocation2] sm:$0xff]
    %v102 = vld [vmem:[#allocation2 + $0x8] sm:$0xff]
    %v103 = vld [vmem:[#allocation5] sm:$0xff]
    %v104 = vld [vmem:[#allocation5 + $0x8] sm:$0xff]
    %v105 = vld [vmem:[#allocation5 + $0x10] sm:$0xff]
    %v106 = vld [vmem:[#allocation5 + $0x18] sm:$0xff]
    %v107 = vld [vmem:[#allocation5 + $0x20] sm:$0xff]
    %v108 = vld [vmem:[#allocation5 + $0x28] sm:$0xff]
    %v109 = vld [vmem:[#allocation5 + $0x30] sm:$0xff]
    %v110 = vld [vmem:[#allocation5 + $0x38] sm:$0xff]
    %v111 = vld [vmem:[#allocation5 + $0x40] sm:$0xff]
    %v112 = vld [vmem:[#allocation5 + $0x48] sm:$0xff]
    %v113 = vld [vmem:[#allocation5 + $0x50] sm:$0xff]
    %v114 = vld [vmem:[#allocation5 + $0x58] sm:$0xff]
    %v115 = vld [vmem:[#allocation5 + $0x60] sm:$0xff]
    %v116 = vld [vmem:[#allocation5 + $0x68] sm:$0xff]
    %v117 = vld [vmem:[#allocation5 + $0x70] sm:$0xff]
    %v118 = vld [vmem:[#allocation5 + $0x78] sm:$0xff]
    %v119 = vld [vmem:[%s2] sm:$0x1]
    %v121 = vlaneseq
    %v122 = vshrl.u32 %v121, 7
    %v123 = vsub.s32 0, %v122
    %v124 = vrot.slane %v119, %v123
    %126 = vmatprep.subr.mxu0 0.0
    %127 = vmatpush1.msra.mxu0 %v103
    %128 = vmatprep.subr.mxu0 0.0
    %129 = vmatpush1.msra.mxu0 %v104
    %130 = vmatprep.subr.mxu0 0.0
    %131 = vmatpush1.msra.mxu0 %v105
    %132 = vmatprep.subr.mxu0 0.0
    %133 = vmatpush1.msra.mxu0 %v106
    %134 = vmatprep.subr.mxu0 0.0
    %135 = vmatpush1.msra.mxu0 %v107
    %136 = vmatprep.subr.mxu0 0.0
    %137 = vmatpush1.msra.mxu0 %v108
    %138 = vmatprep.subr.mxu0 0.0
    %139 = vmatpush1.msra.mxu0 %v109
    %140 = vmatprep.subr.mxu0 0.0
    %141 = vmatpush1.msra.mxu0 %v110
    %142 = vmatprep.subr.mxu0 0.0
    %143 = vmatpush1.msra.mxu0 %v111
    %144 = vmatprep.subr.mxu0 0.0
    %145 = vmatpush1.msra.mxu0 %v112
    %146 = vmatprep.subr.mxu0 0.0
    %147 = vmatpush1.msra.mxu0 %v113
    %148 = vmatprep.subr.mxu0 0.0
    %149 = vmatpush1.msra.mxu0 %v114
    %150 = vmatprep.subr.mxu0 0.0
    %151 = vmatpush1.msra.mxu0 %v115
    %152 = vmatprep.subr.mxu0 0.0
    %153 = vmatpush1.msra.mxu0 %v116
    %154 = vmatprep.subr.mxu0 0.0
    %155 = vmatpush1.msra.mxu0 %v117
    %156 = vmatprep.subr.mxu0 0.0
    %157 = vmatpush1.msra.mxu0 %v118
    %158 = vmatprep.subr.mxu0 0.0
    %159 = vmatpush1.msra.mxu0 0.0
    %160 = vmatprep.subr.mxu0 0.0
    %161 = vmatpush1.msra.mxu0 0.0
    %162 = vmatprep.subr.mxu0 0.0
    %163 = vmatpush1.msra.mxu0 0.0
    %164 = vmatprep.subr.mxu0 0.0
    %165 = vmatpush1.msra.mxu0 0.0
    %166 = vmatprep.subr.mxu0 0.0
    %167 = vmatpush1.msra.mxu0 0.0
    %168 = vmatprep.subr.mxu0 0.0
    %169 = vmatpush1.msra.mxu0 0.0
    %170 = vmatprep.subr.mxu0 0.0
    %171 = vmatpush1.msra.mxu0 0.0
    %172 = vmatprep.subr.mxu0 0.0
    %173 = vmatpush1.msra.mxu0 0.0
    %174 = vmatprep.subr.mxu0 0.0
    %175 = vmatpush1.msra.mxu0 0.0
    %176 = vmatprep.subr.mxu0 0.0
    %177 = vmatpush1.msra.mxu0 0.0
    %178 = vmatprep.subr.mxu0 0.0
    %179 = vmatpush1.msra.mxu0 0.0
    %180 = vmatprep.subr.mxu0 0.0
    %181 = vmatpush1.msra.mxu0 0.0
    %182 = vmatprep.subr.mxu0 0.0
    %183 = vmatpush1.msra.mxu0 0.0
    %184 = vmatprep.subr.mxu0 0.0
    %185 = vmatpush1.msra.mxu0 0.0
    %186 = vmatprep.subr.mxu0 0.0
    %187 = vmatpush1.msra.mxu0 0.0
    %188 = vmatprep.subr.mxu0 0.0
    %189 = vmatpush1.msra.mxu0 0.0
    %190 = vmatprep.mubr.f32.mxu0 0.0
    %191 = vmatmul.mubr.f32.gmra.mrb[0].mxu0 %v101
    %v192 = vpop.f32.mrb[0].mxu0
    %v193 = vadd.f32 %v124, %v192
    %v194 = vpop.f32.mrb[0].mxu0
    %195 = vmatprep.mubr.f32.mxu0 0.0
    %196 = vmatmul.mubr.f32.gmra.mrb[0].mxu0 %v102
    %v197 = vpop.f32.mrb[0].mxu0
    %v198 = vadd.f32 %v124, %v197
    %v199 = vpop.f32.mrb[0].mxu0
    %200 = vdwg.mxu0
    %v201 = vld [vmem:[#allocation7] sm:$0xff]
    %v202 = vld [vmem:[#allocation7 + $0x8] sm:$0xff]
    %v203 = vld [vmem:[#allocation7 + $0x10] sm:$0xff]
    %v204 = vld [vmem:[#allocation7 + $0x18] sm:$0xff]
    %v205 = vld [vmem:[#allocation7 + $0x20] sm:$0xff]
    %v206 = vld [vmem:[#allocation7 + $0x28] sm:$0xff]
    %v207 = vld [vmem:[#allocation7 + $0x30] sm:$0xff]
    %v208 = vld [vmem:[#allocation7 + $0x38] sm:$0xff]
    %v209 = vld [vmem:[#allocation7 + $0x40] sm:$0xff]
    %v210 = vld [vmem:[#allocation7 + $0x48] sm:$0xff]
    %v211 = vld [vmem:[#allocation7 + $0x50] sm:$0xff]
    %v212 = vld [vmem:[#allocation7 + $0x58] sm:$0xff]
    %v213 = vld [vmem:[#allocation7 + $0x60] sm:$0xff]
    %v214 = vld [vmem:[#allocation7 + $0x68] sm:$0xff]
    %v215 = vld [vmem:[#allocation7 + $0x70] sm:$0xff]
    %v216 = vld [vmem:[#allocation7 + $0x78] sm:$0xff]
    %v217 = vld [vmem:[%s4] sm:$0x1]
    %v219 = vlaneseq
    %v220 = vshrl.u32 %v219, 7
    %v221 = vsub.s32 0, %v220
    %v222 = vrot.slane %v217, %v221
    %224 = vmatprep.subr.mxu0 0.0
    %225 = vmatpush1.msra.mxu0 %v201
    %226 = vmatprep.subr.mxu0 0.0
    %227 = vmatpush1.msra.mxu0 %v202
    %228 = vmatprep.subr.mxu0 0.0
    %229 = vmatpush1.msra.mxu0 %v203
    %230 = vmatprep.subr.mxu0 0.0
    %231 = vmatpush1.msra.mxu0 %v204
    %232 = vmatprep.subr.mxu0 0.0
    %233 = vmatpush1.msra.mxu0 %v205
    %234 = vmatprep.subr.mxu0 0.0
    %235 = vmatpush1.msra.mxu0 %v206
    %236 = vmatprep.subr.mxu0 0.0
    %237 = vmatpush1.msra.mxu0 %v207
    %238 = vmatprep.subr.mxu0 0.0
    %239 = vmatpush1.msra.mxu0 %v208
    %240 = vmatprep.subr.mxu0 0.0
    %241 = vmatpush1.msra.mxu0 %v209
    %242 = vmatprep.subr.mxu0 0.0
    %243 = vmatpush1.msra.mxu0 %v210
    %244 = vmatprep.subr.mxu0 0.0
    %245 = vmatpush1.msra.mxu0 %v211
    %246 = vmatprep.subr.mxu0 0.0
    %247 = vmatpush1.msra.mxu0 %v212
    %248 = vmatprep.subr.mxu0 0.0
    %249 = vmatpush1.msra.mxu0 %v213
    %250 = vmatprep.subr.mxu0 0.0
    %251 = vmatpush1.msra.mxu0 %v214
    %252 = vmatprep.subr.mxu0 0.0
    %253 = vmatpush1.msra.mxu0 %v215
    %254 = vmatprep.subr.mxu0 0.0
    %255 = vmatpush1.msra.mxu0 %v216
    %256 = vmatprep.subr.mxu0 0.0
    %257 = vmatpush1.msra.mxu0 0.0
    %258 = vmatprep.subr.mxu0 0.0
    %259 = vmatpush1.msra.mxu0 0.0
    %260 = vmatprep.subr.mxu0 0.0
    %261 = vmatpush1.msra.mxu0 0.0
    %262 = vmatprep.subr.mxu0 0.0
    %263 = vmatpush1.msra.mxu0 0.0
    %264 = vmatprep.subr.mxu0 0.0
    %265 = vmatpush1.msra.mxu0 0.0
    %266 = vmatprep.subr.mxu0 0.0
    %267 = vmatpush1.msra.mxu0 0.0
    %268 = vmatprep.subr.mxu0 0.0
    %269 = vmatpush1.msra.mxu0 0.0
    %270 = vmatprep.subr.mxu0 0.0
    %271 = vmatpush1.msra.mxu0 0.0
    %272 = vmatprep.subr.mxu0 0.0
    %273 = vmatpush1.msra.mxu0 0.0
    %274 = vmatprep.subr.mxu0 0.0
    %275 = vmatpush1.msra.mxu0 0.0
    %276 = vmatprep.subr.mxu0 0.0
    %277 = vmatpush1.msra.mxu0 0.0
    %278 = vmatprep.subr.mxu0 0.0
    %279 = vmatpush1.msra.mxu0 0.0
    %280 = vmatprep.subr.mxu0 0.0
    %281 = vmatpush1.msra.mxu0 0.0
    %282 = vmatprep.subr.mxu0 0.0
    %283 = vmatpush1.msra.mxu0 0.0
    %284 = vmatprep.subr.mxu0 0.0
    %285 = vmatpush1.msra.mxu0 0.0
    %286 = vmatprep.subr.mxu0 0.0
    %287 = vmatpush1.msra.mxu0 0.0
    %288 = vmatprep.mubr.f32.mxu0 0.0
    %289 = vmatmul.mubr.f32.gmra.mrb[0].mxu0 %v193
    %v290 = vpop.f32.mrb[0].mxu0
    %v291 = vadd.f32 %v222, %v290
    %v292 = vpop.f32.mrb[0].mxu0
    %293 = vmatprep.mubr.f32.mxu0 0.0
    %294 = vmatmul.mubr.f32.gmra.mrb[0].mxu0 %v198
    %v295 = vpop.f32.mrb[0].mxu0
    %v296 = vadd.f32 %v222, %v295
    %v297 = vpop.f32.mrb[0].mxu0
    %298 = vdwg.mxu0
    %v299 = vmax.f32 %v291, 0.0
    %v300 = vmax.f32 %v296, 0.0
    %v301 = vld [vmem:[#allocation8] sm:$0xff]
    %v302 = vld [vmem:[#allocation8 + $0x8] sm:$0xff]
    %v303 = vld [vmem:[#allocation8 + $0x10] sm:$0xff]
    %v304 = vld [vmem:[#allocation8 + $0x18] sm:$0xff]
    %v305 = vld [vmem:[#allocation8 + $0x20] sm:$0xff]
    %v306 = vld [vmem:[#allocation8 + $0x28] sm:$0xff]
    %v307 = vld [vmem:[#allocation8 + $0x30] sm:$0xff]
    %v308 = vld [vmem:[#allocation8 + $0x38] sm:$0xff]
    %v309 = vld [vmem:[#allocation8 + $0x40] sm:$0xff]
    %v310 = vld [vmem:[#allocation8 + $0x48] sm:$0xff]
    %v311 = vld [vmem:[#allocation8 + $0x50] sm:$0xff]
    %v312 = vld [vmem:[#allocation8 + $0x58] sm:$0xff]
    %v313 = vld [vmem:[#allocation8 + $0x60] sm:$0xff]
    %v314 = vld [vmem:[#allocation8 + $0x68] sm:$0xff]
    %v315 = vld [vmem:[#allocation8 + $0x70] sm:$0xff]
    %v316 = vld [vmem:[#allocation8 + $0x78] sm:$0xff]
    %v317 = vld [vmem:[%s6] sm:$0x1]
    %v319 = vlaneseq
    %v320 = vshrl.u32 %v319, 7
    %v321 = vsub.s32 0, %v320
    %v322 = vrot.slane %v317, %v321
    %324 = vmatprep.subr.mxu0 0.0
    %325 = vmatpush1.msra.mxu0 %v301
    %326 = vmatprep.subr.mxu0 0.0
    %327 = vmatpush1.msra.mxu0 %v302
    %328 = vmatprep.subr.mxu0 0.0
    %329 = vmatpush1.msra.mxu0 %v303
    %330 = vmatprep.subr.mxu0 0.0
    %331 = vmatpush1.msra.mxu0 %v304
    %332 = vmatprep.subr.mxu0 0.0
    %333 = vmatpush1.msra.mxu0 %v305
    %334 = vmatprep.subr.mxu0 0.0
    %335 = vmatpush1.msra.mxu0 %v306
    %336 = vmatprep.subr.mxu0 0.0
    %337 = vmatpush1.msra.mxu0 %v307
    %338 = vmatprep.subr.mxu0 0.0
    %339 = vmatpush1.msra.mxu0 %v308
    %340 = vmatprep.subr.mxu0 0.0
    %341 = vmatpush1.msra.mxu0 %v309
    %342 = vmatprep.subr.mxu0 0.0
    %343 = vmatpush1.msra.mxu0 %v310
    %344 = vmatprep.subr.mxu0 0.0
    %345 = vmatpush1.msra.mxu0 %v311
    %346 = vmatprep.subr.mxu0 0.0
    %347 = vmatpush1.msra.mxu0 %v312
    %348 = vmatprep.subr.mxu0 0.0
    %349 = vmatpush1.msra.mxu0 %v313
    %350 = vmatprep.subr.mxu0 0.0
    %351 = vmatpush1.msra.mxu0 %v314
    %352 = vmatprep.subr.mxu0 0.0
    %353 = vmatpush1.msra.mxu0 %v315
    %354 = vmatprep.subr.mxu0 0.0
    %355 = vmatpush1.msra.mxu0 %v316
    %356 = vmatprep.subr.mxu0 0.0
    %357 = vmatpush1.msra.mxu0 0.0
    %358 = vmatprep.subr.mxu0 0.0
    %359 = vmatpush1.msra.mxu0 0.0
    %360 = vmatprep.subr.mxu0 0.0
    %361 = vmatpush1.msra.mxu0 0.0
    %362 = vmatprep.subr.mxu0 0.0
    %363 = vmatpush1.msra.mxu0 0.0
    %364 = vmatprep.subr.mxu0 0.0
    %365 = vmatpush1.msra.mxu0 0.0
    %366 = vmatprep.subr.mxu0 0.0
    %367 = vmatpush1.msra.mxu0 0.0
    %368 = vmatprep.subr.mxu0 0.0
    %369 = vmatpush1.msra.mxu0 0.0
    %370 = vmatprep.subr.mxu0 0.0
    %371 = vmatpush1.msra.mxu0 0.0
    %372 = vmatprep.subr.mxu0 0.0
    %373 = vmatpush1.msra.mxu0 0.0
    %374 = vmatprep.subr.mxu0 0.0
    %375 = vmatpush1.msra.mxu0 0.0
    %376 = vmatprep.subr.mxu0 0.0
    %377 = vmatpush1.msra.mxu0 0.0
    %378 = vmatprep.subr.mxu0 0.0
    %379 = vmatpush1.msra.mxu0 0.0
    %380 = vmatprep.subr.mxu0 0.0
    %381 = vmatpush1.msra.mxu0 0.0
    %382 = vmatprep.subr.mxu0 0.0
    %383 = vmatpush1.msra.mxu0 0.0
    %384 = vmatprep.subr.mxu0 0.0
    %385 = vmatpush1.msra.mxu0 0.0
    %386 = vmatprep.subr.mxu0 0.0
    %387 = vmatpush1.msra.mxu0 0.0
    %388 = vmatprep.mubr.f32.mxu0 0.0
    %389 = vmatmul.mubr.f32.gmra.mrb[0].mxu0 %v299
    %v390 = vpop.f32.mrb[0].mxu0
    %v391 = vadd.f32 %v322, %v390
    %v392 = vpop.f32.mrb[0].mxu0
    %393 = vmatprep.mubr.f32.mxu0 0.0
    %394 = vmatmul.mubr.f32.gmra.mrb[0].mxu0 %v300
    %v395 = vpop.f32.mrb[0].mxu0
    %v396 = vadd.f32 %v322, %v395
    %v397 = vpop.f32.mrb[0].mxu0
    %398 = vdwg.mxu0
    %v399 = vld [vmem:[#allocation10] sm:$0xff]
    %v400 = vld [vmem:[#allocation10 + $0x8] sm:$0xff]
    %v401 = vld [vmem:[#allocation10 + $0x10] sm:$0xff]
    %v402 = vld [vmem:[#allocation10 + $0x18] sm:$0xff]
    %v403 = vld [vmem:[#allocation10 + $0x20] sm:$0xff]
    %v404 = vld [vmem:[#allocation10 + $0x28] sm:$0xff]
    %v405 = vld [vmem:[#allocation10 + $0x30] sm:$0xff]
    %v406 = vld [vmem:[#allocation10 + $0x38] sm:$0xff]
    %v407 = vld [vmem:[#allocation10 + $0x40] sm:$0xff]
    %v408 = vld [vmem:[#allocation10 + $0x48] sm:$0xff]
    %v409 = vld [vmem:[#allocation10 + $0x50] sm:$0xff]
    %v410 = vld [vmem:[#allocation10 + $0x58] sm:$0xff]
    %v411 = vld [vmem:[#allocation10 + $0x60] sm:$0xff]
    %v412 = vld [vmem:[#allocation10 + $0x68] sm:$0xff]
    %v413 = vld [vmem:[#allocation10 + $0x70] sm:$0xff]
    %v414 = vld [vmem:[#allocation10 + $0x78] sm:$0xff]
    %v415 = vld [vmem:[%s8] sm:$0x1]
    %v417 = vlaneseq
    %v418 = vshrl.u32 %v417, 7
    %v419 = vsub.s32 0, %v418
    %v420 = vrot.slane %v415, %v419
    %422 = vmatprep.subr.mxu0 0.0
    %423 = vmatpush1.msra.mxu0 %v399
    %424 = vmatprep.subr.mxu0 0.0
    %425 = vmatpush1.msra.mxu0 %v400
    %426 = vmatprep.subr.mxu0 0.0
    %427 = vmatpush1.msra.mxu0 %v401
    %428 = vmatprep.subr.mxu0 0.0
    %429 = vmatpush1.msra.mxu0 %v402
    %430 = vmatprep.subr.mxu0 0.0
    %431 = vmatpush1.msra.mxu0 %v403
    %432 = vmatprep.subr.mxu0 0.0
    %433 = vmatpush1.msra.mxu0 %v404
    %434 = vmatprep.subr.mxu0 0.0
    %435 = vmatpush1.msra.mxu0 %v405
    %436 = vmatprep.subr.mxu0 0.0
    %437 = vmatpush1.msra.mxu0 %v406
    %438 = vmatprep.subr.mxu0 0.0
    %439 = vmatpush1.msra.mxu0 %v407
    %440 = vmatprep.subr.mxu0 0.0
    %441 = vmatpush1.msra.mxu0 %v408
    %442 = vmatprep.subr.mxu0 0.0
    %443 = vmatpush1.msra.mxu0 %v409
    %444 = vmatprep.subr.mxu0 0.0
    %445 = vmatpush1.msra.mxu0 %v410
    %446 = vmatprep.subr.mxu0 0.0
    %447 = vmatpush1.msra.mxu0 %v411
    %448 = vmatprep.subr.mxu0 0.0
    %449 = vmatpush1.msra.mxu0 %v412
    %450 = vmatprep.subr.mxu0 0.0
    %451 = vmatpush1.msra.mxu0 %v413
    %452 = vmatprep.subr.mxu0 0.0
    %453 = vmatpush1.msra.mxu0 %v414
    %454 = vmatprep.subr.mxu0 0.0
    %455 = vmatpush1.msra.mxu0 0.0
    %456 = vmatprep.subr.mxu0 0.0
    %457 = vmatpush1.msra.mxu0 0.0
    %458 = vmatprep.subr.mxu0 0.0
    %459 = vmatpush1.msra.mxu0 0.0
    %460 = vmatprep.subr.mxu0 0.0
    %461 = vmatpush1.msra.mxu0 0.0
    %462 = vmatprep.subr.mxu0 0.0
    %463 = vmatpush1.msra.mxu0 0.0
    %464 = vmatprep.subr.mxu0 0.0
    %465 = vmatpush1.msra.mxu0 0.0
    %466 = vmatprep.subr.mxu0 0.0
    %467 = vmatpush1.msra.mxu0 0.0
    %468 = vmatprep.subr.mxu0 0.0
    %469 = vmatpush1.msra.mxu0 0.0
    %470 = vmatprep.subr.mxu0 0.0
    %471 = vmatpush1.msra.mxu0 0.0
    %472 = vmatprep.subr.mxu0 0.0
    %473 = vmatpush1.msra.mxu0 0.0
    %474 = vmatprep.subr.mxu0 0.0
    %475 = vmatpush1.msra.mxu0 0.0
    %476 = vmatprep.subr.mxu0 0.0
    %477 = vmatpush1.msra.mxu0 0.0
    %478 = vmatprep.subr.mxu0 0.0
    %479 = vmatpush1.msra.mxu0 0.0
    %480 = vmatprep.subr.mxu0 0.0
    %481 = vmatpush1.msra.mxu0 0.0
    %482 = vmatprep.subr.mxu0 0.0
    %483 = vmatpush1.msra.mxu0 0.0
    %484 = vmatprep.subr.mxu0 0.0
    %485 = vmatpush1.msra.mxu0 0.0
    %486 = vmatprep.mubr.f32.mxu0 0.0
    %487 = vmatmul.mubr.f32.gmra.mrb[0].mxu0 %v391
    %v488 = vpop.f32.mrb[0].mxu0
    %v489 = vadd.f32 %v420, %v488
    %v490 = vpop.f32.mrb[0].mxu0
    %491 = vmatprep.mubr.f32.mxu0 0.0
    %492 = vmatmul.mubr.f32.gmra.mrb[0].mxu0 %v396
    %v493 = vpop.f32.mrb[0].mxu0
    %v494 = vadd.f32 %v420, %v493
    %v495 = vpop.f32.mrb[0].mxu0
    %496 = vdwg.mxu0
    %497 = vst [vmem:[#allocation11] sm:$0xff] %v489
    %498 = vst [vmem:[#allocation11 + $0x8] sm:$0xff] %v494
    // Predicated region
    $region58: #{tpu_custom_call.1} parent=1 // pred_check
      _
    $region59: #{tpu_custom_call.1} parent=1 // pred_check_branch
      %500 = sbr.rel (0) target = $region61
    $region60: #{tpu_custom_call.1} parent=1 // pred_region
      %s502 = ssub.s32 256, 256
      %503 = vsyncadd [#allocation4], %s502
      %s504 = sshll.u32 [#allocation11], 4
      %s505 = int_to_ptr.vmem [resolvable:$true] %s504
      %510 = dma.vmem_to_hbm [thread:$0]  %s505, 256, %s9, [#allocation4], 128, 128, 8
    $region61: #{tpu_custom_call.1} parent=1 // pred_fallthru
      _
    // Predicated region
    $region62: #{tpu_custom_call.1} parent=1 // pred_check
      _
    $region63: #{tpu_custom_call.1} parent=1 // pred_check_branch
      %512 = sbr.rel (0) target = $region65
    $region64: #{tpu_custom_call.1} parent=1 // pred_region
      %513 = dma.done [#allocation4], 256
    $region65: #{tpu_custom_call.1} parent=1 // pred_fallthru
      _
    %514 = vsyncpa [#allocation3], 1
    %515 = vsyncpa [#allocation6], 1
    %516 = vsyncpa [#allocation9], 1
    %517 = vsyncpa [#allocation4], 1

</llo_original>
